<compile_context>
chip_gen: v7x
topology: tpu7x:2x2x1
jax: 0.10.0
libtpu: 0.0.40
codegen_flags: <defaults>
</compile_context>

<pallas_src>
import functools

import jax
import jax.numpy as jnp
import numpy as np
from jax.experimental import pallas as pl
from jax.experimental.pallas import tpu as pltpu

LANE = 128


def _round_up(v, m):
    return ((v + m - 1) // m) * m


def _dmpnn_kernel(x_ref, e_ref, s_ref, a_ref, dt_ref,
                  w_in_ref, w_h_ref, w_ox_ref, w_oh_ref, out_ref,
                  *, num_steps):
    f32 = jnp.float32
    bf16 = jnp.bfloat16

    # ---- hoisted loads (once, outside the unrolled step loop) -----------
    x = x_ref[...]            # [Np, Kp] f32, x in cols [0, Fn)
    e = e_ref[...]            # [Ep, Kp] f32, e in cols [Fn, Fn+Fe)
    S = s_ref[...]            # [Ep, Np] bf16 (0/1, exact)   -- fed to MXU as-is
    A = a_ref[...]            # [Ep, Ep] bf16 ({-1,0,1}, exact)
    Dt = dt_ref[...]          # [Np, Ep] bf16 (0/1, exact)
    w_in = w_in_ref[...]      # [Kp, Hp] f32  = [W_ix ; W_ie] padded
    w_h = w_h_ref[...]        # [Hp, Hp] bf16
    w_ox = w_ox_ref[...]      # [Kp, Hp] f32
    w_oh = w_oh_ref[...]      # [Hp, Hp] f32

    # ---- initial edge hidden state (fused input matmul) -----------------
    # x_src and e occupy disjoint column ranges of the padded feature axis,
    # so the addition implements the concatenation [x_src | e].
    # bf16 x bf16 MXU dot, f32 accumulation.
    cat_in = jnp.dot(S, x.astype(bf16), preferred_element_type=f32) + e
    h0 = jnp.maximum(jnp.dot(cat_in, w_in, preferred_element_type=f32), 0.0)

    # ---- message passing: one E x E bf16 matmul per step (A = S@Dt - R) --
    h = h0
    for _ in range(num_steps - 1):
        msg = jnp.dot(A, h.astype(bf16), preferred_element_type=f32)
        h = jnp.maximum(
            h0 + jnp.dot(msg.astype(bf16), w_h, preferred_element_type=f32),
            0.0)

    # ---- node readout: two dots, no lane-axis concat ---------------------
    m_v = jnp.dot(Dt, h.astype(bf16), preferred_element_type=f32)   # [Np, Hp]
    out = (jnp.dot(x, w_ox, preferred_element_type=f32)
           + jnp.dot(m_v, w_oh, preferred_element_type=f32))
    out_ref[...] = jnp.maximum(out, 0.0)


def prepare_graph(src, dst, rev, num_nodes):
    """One-time per-graph preprocessing (pure numpy, no dense XLA matmuls)."""
    src = np.asarray(src, np.int32)
    dst = np.asarray(dst, np.int32)
    rev = np.asarray(rev, np.int32)
    E = int(src.shape[0])
    N = int(num_nodes)
    Np = _round_up(N, LANE)
    Ep = _round_up(E, LANE)

    S = np.zeros((Ep, Np), np.float32)
    S[np.arange(E), src] = 1.0
    Dt = np.zeros((Np, Ep), np.float32)
    Dt[dst, np.arange(E)] = 1.0
    # A[k, k'] = [dst(k') == src(k)] - [k' == rev(k)]  (== S@Dt - R), built
    # directly from the index vectors.
    A = (dst[None, :] == src[:, None]).astype(np.float32)
    A[np.arange(E), rev] -= 1.0
    A_p = np.zeros((Ep, Ep), np.float32)
    A_p[:E, :E] = A

    return dict(
        N=N, E=E, Np=Np, Ep=Ep,
        S=jnp.asarray(S, jnp.bfloat16),     # {0,1}   -> exact in bf16
        A=jnp.asarray(A_p, jnp.bfloat16),   # {-1,0,1}-> exact in bf16
        Dt=jnp.asarray(Dt, jnp.bfloat16),
    )


def prepare_params(W_ix, W_ie, W_h, W_ox, W_oh):
    """One-time weight padding / casting (lane-padded, fused input weight)."""
    Fn, H = W_ix.shape
    Fe = W_ie.shape[0]
    Kp = _round_up(Fn + Fe, LANE)
    Hp = _round_up(H, LANE)
    f32 = jnp.float32

    w_in = (jnp.zeros((Kp, Hp), f32)
            .at[:Fn, :H].set(W_ix)
            .at[Fn:Fn + Fe, :H].set(W_ie))
    w_h = jnp.zeros((Hp, Hp), f32).at[:H, :H].set(W_h).astype(jnp.bfloat16)
    w_ox = jnp.zeros((Kp, Hp), f32).at[:Fn, :H].set(W_ox)
    w_oh = jnp.zeros((Hp, Hp), f32).at[:H, :H].set(W_oh)
    return dict(Fn=Fn, Fe=Fe, H=H, Kp=Kp, Hp=Hp,
                w_in=w_in, w_h=w_h, w_ox=w_ox, w_oh=w_oh)


def graph_dmpnn_forward(x, e_feat, graph, params, *, num_steps=3):
    N, Fn = x.shape
    E, Fe = e_feat.shape
    assert N == graph["N"] and E == graph["E"]
    assert Fn == params["Fn"] and Fe == params["Fe"]
    Np, Ep = graph["Np"], graph["Ep"]
    Kp, Hp, H = params["Kp"], params["Hp"], params["H"]
    f32 = jnp.float32

    # activations / features: f32, lane-padded, disjoint column ranges
    x_p = jnp.zeros((Np, Kp), f32).at[:N, :Fn].set(x)
    e_p = jnp.zeros((Ep, Kp), f32).at[:E, Fn:Fn + Fe].set(e_feat)

    buffers = (x_p, e_p, graph["S"], graph["A"], graph["Dt"],
               params["w_in"], params["w_h"], params["w_ox"], params["w_oh"])

    in_bytes = sum(int(np.prod(b.shape)) * b.dtype.itemsize for b in buffers)
    out_bytes = Np * Hp * 4
    # rough in-kernel working set: h0/h/msg/m_v/cat_in + bf16 casts
    work_bytes = 6 * Ep * max(Hp, Kp) * 4
    vmem_limit = int(min(64 * 1024 * 1024,
                         max(16 * 1024 * 1024,
                             2 * (in_bytes + out_bytes + work_bytes))))

    flops = 2 * (Ep * Np * Kp + Ep * Kp * Hp
                 + (num_steps - 1) * (Ep * Ep * Hp + Ep * Hp * Hp)
                 + Np * Ep * Hp + Np * Kp * Hp + Np * Hp * Hp)

    kernel = functools.partial(_dmpnn_kernel, num_steps=num_steps)
    vmem_spec = pl.BlockSpec(memory_space=pltpu.MemorySpace.VMEM)

    out_p = pl.pallas_call(
        kernel,
        out_shape=jax.ShapeDtypeStruct((Np, Hp), f32),
        in_specs=[vmem_spec] * len(buffers),
        out_specs=vmem_spec,
        compiler_params=pltpu.CompilerParams(vmem_limit_bytes=vmem_limit),
        cost_estimate=pl.CostEstimate(
            flops=flops, transcendentals=0,
            bytes_accessed=in_bytes + out_bytes),
    )(*buffers)

    return out_p[:N, :H]


def _reference_forward(x, e_feat, src, dst, rev,
                       W_ix, W_ie, W_h, W_ox, W_oh, *, num_steps=3):
    # pure-JAX f32 reference of the identical D-MPNN math
    N = x.shape[0]
    E = e_feat.shape[0]
    src = jnp.asarray(src)
    dst = jnp.asarray(dst)
    rev = jnp.asarray(rev)
    S = jnp.zeros((E, N), jnp.float32).at[jnp.arange(E), src].set(1.0)
    Dt = jnp.zeros((N, E), jnp.float32).at[dst, jnp.arange(E)].set(1.0)
    R = jnp.zeros((E, E), jnp.float32).at[jnp.arange(E), rev].set(1.0)

    h0 = jax.nn.relu(S @ x @ W_ix + e_feat @ W_ie)
    h = h0
    for _ in range(num_steps - 1):
        msg = S @ (Dt @ h) - R @ h
        h = jax.nn.relu(h0 + msg @ W_h)
    return jax.nn.relu(x @ W_ox + (Dt @ h) @ W_oh)


if __name__ == "__main__":
    # ---- small deterministic problem ------------------------------------
    N = 16          # nodes
    Fn = 16         # node feature dim
    Fe = 8          # edge feature dim
    H = 32          # hidden dim
    T = 3           # message-passing steps

    # directed ring graph: edges i -> (i+1)%N and their reverses => E = 2N
    src, dst = [], []
    for i in range(N):
        src += [i, (i + 1) % N]
        dst += [(i + 1) % N, i]
    E = len(src)
    rev = [k + 1 if k % 2 == 0 else k - 1 for k in range(E)]

    key = jax.random.PRNGKey(0)
    ks = jax.random.split(key, 7)
    x = jax.random.normal(ks[0], (N, Fn), jnp.float32)
    e_feat = jax.random.normal(ks[1], (E, Fe), jnp.float32)
    W_ix = jax.random.normal(ks[2], (Fn, H), jnp.float32) * 0.1
    W_ie = jax.random.normal(ks[3], (Fe, H), jnp.float32) * 0.1
    W_h = jax.random.normal(ks[4], (H, H), jnp.float32) * 0.1
    W_ox = jax.random.normal(ks[5], (Fn, H), jnp.float32) * 0.1
    W_oh = jax.random.normal(ks[6], (H, H), jnp.float32) * 0.1

    graph = prepare_graph(src, dst, rev, num_nodes=N)      # once per graph
    params = prepare_params(W_ix, W_ie, W_h, W_ox, W_oh)   # once per weights

    out = graph_dmpnn_forward(x, e_feat, graph, params, num_steps=T)
    out = jax.block_until_ready(out)

    ref = _reference_forward(x, e_feat, src, dst, rev,
                             W_ix, W_ie, W_h, W_ox, W_oh, num_steps=T)
    assert out.shape == (N, H)
    # Tolerance loosened vs. the all-f32 version: the hot loop now runs with
    # bf16 MXU operands (f32 accumulation), as recommended by the perf review.
    np.testing.assert_allclose(np.asarray(out), np.asarray(ref),
                               rtol=3e-2, atol=3e-2)
    print("KERNEL_OK")
</pallas_src>

<mosaic_0001>
module attributes {stable_mosaic.version = 11 : i64} {
  func.func @_dmpnn_kernel(%arg0: memref<128x128xf32, #tpu.memory_space<vmem>>, %arg1: memref<128x128xf32, #tpu.memory_space<vmem>>, %arg2: memref<128x128xbf16, #tpu.memory_space<vmem>>, %arg3: memref<128x128xbf16, #tpu.memory_space<vmem>>, %arg4: memref<128x128xbf16, #tpu.memory_space<vmem>>, %arg5: memref<128x128xf32, #tpu.memory_space<vmem>>, %arg6: memref<128x128xbf16, #tpu.memory_space<vmem>>, %arg7: memref<128x128xf32, #tpu.memory_space<vmem>>, %arg8: memref<128x128xf32, #tpu.memory_space<vmem>>, %arg9: memref<128x128xf32, #tpu.memory_space<vmem>>) attributes {dimension_semantics = [], scalar_prefetch = 0 : i64, scratch_operands = 0 : i64, tpu.core_type = #tpu.core_type<tc>} {
    %c0 = arith.constant 0 : index
    %c0_0 = arith.constant 0 : index
    %0 = vector.load %arg0[%c0, %c0_0] : memref<128x128xf32, #tpu.memory_space<vmem>>, vector<128x128xf32>
    %c0_1 = arith.constant 0 : index
    %c0_2 = arith.constant 0 : index
    %1 = vector.load %arg1[%c0_1, %c0_2] : memref<128x128xf32, #tpu.memory_space<vmem>>, vector<128x128xf32>
    %c0_3 = arith.constant 0 : index
    %c0_4 = arith.constant 0 : index
    %2 = vector.load %arg2[%c0_3, %c0_4] : memref<128x128xbf16, #tpu.memory_space<vmem>>, vector<128x128xbf16>
    %c0_5 = arith.constant 0 : index
    %c0_6 = arith.constant 0 : index
    %3 = vector.load %arg3[%c0_5, %c0_6] : memref<128x128xbf16, #tpu.memory_space<vmem>>, vector<128x128xbf16>
    %c0_7 = arith.constant 0 : index
    %c0_8 = arith.constant 0 : index
    %4 = vector.load %arg4[%c0_7, %c0_8] : memref<128x128xbf16, #tpu.memory_space<vmem>>, vector<128x128xbf16>
    %c0_9 = arith.constant 0 : index
    %c0_10 = arith.constant 0 : index
    %5 = vector.load %arg5[%c0_9, %c0_10] : memref<128x128xf32, #tpu.memory_space<vmem>>, vector<128x128xf32>
    %c0_11 = arith.constant 0 : index
    %c0_12 = arith.constant 0 : index
    %6 = vector.load %arg6[%c0_11, %c0_12] : memref<128x128xbf16, #tpu.memory_space<vmem>>, vector<128x128xbf16>
    %c0_13 = arith.constant 0 : index
    %c0_14 = arith.constant 0 : index
    %7 = vector.load %arg7[%c0_13, %c0_14] : memref<128x128xf32, #tpu.memory_space<vmem>>, vector<128x128xf32>
    %c0_15 = arith.constant 0 : index
    %c0_16 = arith.constant 0 : index
    %8 = vector.load %arg8[%c0_15, %c0_16] : memref<128x128xf32, #tpu.memory_space<vmem>>, vector<128x128xf32>
    %9 = arith.truncf %0 : vector<128x128xf32> to vector<128x128xbf16>
    %cst = arith.constant dense<0.000000e+00> : vector<128x128xf32>
    %10 = tpu.matmul %2, %9, %cst {dimension_numbers = #tpu.dot_dimension_numbers<[1], [0], [0], [1], [0, 0, 1, 1], [], []>} : vector<128x128xbf16>, vector<128x128xbf16>, vector<128x128xf32> -> vector<128x128xf32>
    %11 = arith.addf %10, %1 : vector<128x128xf32>
    %cst_17 = arith.constant dense<0.000000e+00> : vector<128x128xf32>
    %12 = tpu.matmul %11, %5, %cst_17 {dimension_numbers = #tpu.dot_dimension_numbers<[1], [0], [0], [1], [0, 0, 1, 1], [], []>} : vector<128x128xf32>, vector<128x128xf32>, vector<128x128xf32> -> vector<128x128xf32>
    %cst_18 = arith.constant 0.000000e+00 : f32
    %13 = vector.broadcast %cst_18 : f32 to vector<128x128xf32>
    %14 = arith.maximumf %12, %13 : vector<128x128xf32>
    %15 = arith.truncf %14 : vector<128x128xf32> to vector<128x128xbf16>
    %cst_19 = arith.constant dense<0.000000e+00> : vector<128x128xf32>
    %16 = tpu.matmul %3, %15, %cst_19 {dimension_numbers = #tpu.dot_dimension_numbers<[1], [0], [0], [1], [0, 0, 1, 1], [], []>} : vector<128x128xbf16>, vector<128x128xbf16>, vector<128x128xf32> -> vector<128x128xf32>
    %17 = arith.truncf %16 : vector<128x128xf32> to vector<128x128xbf16>
    %cst_20 = arith.constant dense<0.000000e+00> : vector<128x128xf32>
    %18 = tpu.matmul %17, %6, %cst_20 {dimension_numbers = #tpu.dot_dimension_numbers<[1], [0], [0], [1], [0, 0, 1, 1], [], []>} : vector<128x128xbf16>, vector<128x128xbf16>, vector<128x128xf32> -> vector<128x128xf32>
    %19 = arith.addf %14, %18 : vector<128x128xf32>
    %cst_21 = arith.constant 0.000000e+00 : f32
    %20 = vector.broadcast %cst_21 : f32 to vector<128x128xf32>
    %21 = arith.maximumf %19, %20 : vector<128x128xf32>
    %22 = arith.truncf %21 : vector<128x128xf32> to vector<128x128xbf16>
    %cst_22 = arith.constant dense<0.000000e+00> : vector<128x128xf32>
    %23 = tpu.matmul %3, %22, %cst_22 {dimension_numbers = #tpu.dot_dimension_numbers<[1], [0], [0], [1], [0, 0, 1, 1], [], []>} : vector<128x128xbf16>, vector<128x128xbf16>, vector<128x128xf32> -> vector<128x128xf32>
    %24 = arith.truncf %23 : vector<128x128xf32> to vector<128x128xbf16>
    %cst_23 = arith.constant dense<0.000000e+00> : vector<128x128xf32>
    %25 = tpu.matmul %24, %6, %cst_23 {dimension_numbers = #tpu.dot_dimension_numbers<[1], [0], [0], [1], [0, 0, 1, 1], [], []>} : vector<128x128xbf16>, vector<128x128xbf16>, vector<128x128xf32> -> vector<128x128xf32>
    %26 = arith.addf %14, %25 : vector<128x128xf32>
    %cst_24 = arith.constant 0.000000e+00 : f32
    %27 = vector.broadcast %cst_24 : f32 to vector<128x128xf32>
    %28 = arith.maximumf %26, %27 : vector<128x128xf32>
    %29 = arith.truncf %28 : vector<128x128xf32> to vector<128x128xbf16>
    %cst_25 = arith.constant dense<0.000000e+00> : vector<128x128xf32>
    %30 = tpu.matmul %4, %29, %cst_25 {dimension_numbers = #tpu.dot_dimension_numbers<[1], [0], [0], [1], [0, 0, 1, 1], [], []>} : vector<128x128xbf16>, vector<128x128xbf16>, vector<128x128xf32> -> vector<128x128xf32>
    %cst_26 = arith.constant dense<0.000000e+00> : vector<128x128xf32>
    %31 = tpu.matmul %0, %7, %cst_26 {dimension_numbers = #tpu.dot_dimension_numbers<[1], [0], [0], [1], [0, 0, 1, 1], [], []>} : vector<128x128xf32>, vector<128x128xf32>, vector<128x128xf32> -> vector<128x128xf32>
    %cst_27 = arith.constant dense<0.000000e+00> : vector<128x128xf32>
    %32 = tpu.matmul %30, %8, %cst_27 {dimension_numbers = #tpu.dot_dimension_numbers<[1], [0], [0], [1], [0, 0, 1, 1], [], []>} : vector<128x128xf32>, vector<128x128xf32>, vector<128x128xf32> -> vector<128x128xf32>
    %33 = arith.addf %31, %32 : vector<128x128xf32>
    %cst_28 = arith.constant 0.000000e+00 : f32
    %34 = vector.broadcast %cst_28 : f32 to vector<128x128xf32>
    %35 = arith.maximumf %33, %34 : vector<128x128xf32>
    %c0_29 = arith.constant 0 : index
    %c0_30 = arith.constant 0 : index
    %36 = vector.load %arg9[%c0_29, %c0_30] : memref<128x128xf32, #tpu.memory_space<vmem>>, vector<128x128xf32>
    tpu.vector_store %arg9[%c0_29, %c0_30], %35 {strides = array<i32>} : memref<128x128xf32, #tpu.memory_space<vmem>>, vector<128x128xf32>,
    return
  }
}

</mosaic_0001>

<llo_original>
// kernel: tpu_custom_call.1
$region0: #{tpu_custom_call.1}
  #allocation0 [shape = 'u32[]', space=smem, size = 0x4, offset = 0x4, fixed_abs, tag = 'smem constant byte address 0x4 - core index']
  #allocation1 [shape = 'u32[144,128]{1,0:T(1,128)}', space=vmem, size = 0x12000, scoped, tag = 'internal scratch']
  %s0 = inlined_call_operand.hbm [shape: f32[128,128], index: 0, kind: input, shape index: {}]
  %s1 = inlined_call_operand.hbm [shape: f32[128,128], index: 1, kind: input, shape index: {}]
  %s2 = inlined_call_operand.hbm [shape: bf16[128,128], index: 2, kind: input, shape index: {}]
  %s3 = inlined_call_operand.hbm [shape: bf16[128,128], index: 3, kind: input, shape index: {}]
  %s4 = inlined_call_operand.hbm [shape: bf16[128,128], index: 4, kind: input, shape index: {}]
  %s5 = inlined_call_operand.hbm [shape: f32[128,128], index: 5, kind: input, shape index: {}]
  %s6 = inlined_call_operand.hbm [shape: bf16[128,128], index: 6, kind: input, shape index: {}]
  %s7 = inlined_call_operand.hbm [shape: f32[128,128], index: 7, kind: input, shape index: {}]
  %s8 = inlined_call_operand.hbm [shape: f32[128,128], index: 8, kind: input, shape index: {}]
  %s9 = inlined_call_operand.hbm [shape: f32[128,128], index: 9, kind: output, shape index: {}]
  %s10 = sld [smem:[#allocation0]]
  $region82: #{tpu_custom_call.1} parent=0
    _
  %s12 = ssub.s32 1, %s10
  %s13 = scalar_select 0, %s12, %s10
  $region1: #{tpu_custom_call.1} parent=0
    #allocation2 [shape = 'u8[65536]{0}', space=vmem, size = 0x10000, scoped, tag = 'input window, operand 0, single buffered']
    #allocation3 [shape = 's32[1]{0}', space=sflag, size = 0x4, scoped, tag = 'scoped memory for tpu_custom_call.1']
    #allocation4 [shape = 's32[1]{0}', space=sflag, size = 0x4, scoped, tag = 'scoped memory for tpu_custom_call.1']
    #allocation5 [shape = 'u8[65536]{0}', space=vmem, size = 0x10000, scoped, tag = 'input window, operand 1, single buffered']
    #allocation6 [shape = 's32[1]{0}', space=sflag, size = 0x4, scoped, tag = 'scoped memory for tpu_custom_call.1']
    #allocation7 [shape = 'u8[32768]{0}', space=vmem, size = 0x8000, scoped, tag = 'input window, operand 2, single buffered']
    #allocation8 [shape = 'u8[32768]{0}', space=vmem, size = 0x8000, scoped, tag = 'input window, operand 3, single buffered']
    #allocation9 [shape = 's32[1]{0}', space=sflag, size = 0x4, scoped, tag = 'scoped memory for tpu_custom_call.1']
    #allocation10 [shape = 'u8[32768]{0}', space=vmem, size = 0x8000, scoped, tag = 'input window, operand 4, single buffered']
    #allocation11 [shape = 'u8[65536]{0}', space=vmem, size = 0x10000, scoped, tag = 'input window, operand 5, single buffered']
    #allocation12 [shape = 's32[1]{0}', space=sflag, size = 0x4, scoped, tag = 'scoped memory for tpu_custom_call.1']
    #allocation13 [shape = 'u8[32768]{0}', space=vmem, size = 0x8000, scoped, tag = 'input window, operand 6, single buffered']
    #allocation14 [shape = 'u8[65536]{0}', space=vmem, size = 0x10000, scoped, tag = 'input window, operand 7, single buffered']
    #allocation15 [shape = 's32[1]{0}', space=sflag, size = 0x4, scoped, tag = 'scoped memory for tpu_custom_call.1']
    #allocation16 [shape = 'u8[65536]{0}', space=vmem, size = 0x10000, scoped, tag = 'input window, operand 8, single buffered']
    #allocation17 [shape = 'u8[65536]{0}', space=vmem, size = 0x10000, scoped, tag = 'output window, operand 0, single buffered']
    %14 = vsyncpa [#allocation3], 0
    %15 = vsyncpa [#allocation6], 0
    %16 = vsyncpa [#allocation9], 0
    %17 = vsyncpa [#allocation12], 0
    %18 = vsyncpa [#allocation15], 0
    %19 = vsyncpa [#allocation4], 0
    // Predicated region
    $region2: #{tpu_custom_call.1} parent=1 // pred_check
      _
    $region3: #{tpu_custom_call.1} parent=1 // pred_check_branch
      %21 = sbr.rel (0) target = $region5
    $region4: #{tpu_custom_call.1} parent=1 // pred_region
      %s23 = ssub.s32 2048, 2048
      %24 = vsyncadd [#allocation3], %s23
      %s25 = sshll.u32 [#allocation2], 4
      %s26 = int_to_ptr.vmem [resolvable:$true] %s25
      %31 = dma.hbm_to_vmem [thread:$0]  %s0, 2048, %s26, [#allocation3], 128, 128, 8
    $region5: #{tpu_custom_call.1} parent=1 // pred_fallthru
      _
    // Predicated region
    $region6: #{tpu_custom_call.1} parent=1 // pred_check
      _
    $region7: #{tpu_custom_call.1} parent=1 // pred_check_branch
      %33 = sbr.rel (0) target = $region9
    $region8: #{tpu_custom_call.1} parent=1 // pred_region
      %s35 = ssub.s32 2048, 2048
      %36 = vsyncadd [#allocation6], %s35
      %s37 = sshll.u32 [#allocation5], 4
      %s38 = int_to_ptr.vmem [resolvable:$true] %s37
      %43 = dma.hbm_to_vmem [thread:$0]  %s1, 2048, %s38, [#allocation6], 128, 128, 8
    $region9: #{tpu_custom_call.1} parent=1 // pred_fallthru
      _
    // Predicated region
    $region10: #{tpu_custom_call.1} parent=1 // pred_check
      _
    $region11: #{tpu_custom_call.1} parent=1 // pred_check_branch
      %45 = sbr.rel (0) target = $region13
    $region12: #{tpu_custom_call.1} parent=1 // pred_region
      %s47 = ssub.s32 1024, 1024
      %48 = vsyncadd [#allocation6], %s47
      %s49 = sshll.u32 [#allocation7], 4
      %s50 = int_to_ptr.vmem [resolvable:$true] %s49
      %55 = dma.hbm_to_vmem [thread:$0]  %s2, 1024, %s50, [#allocation6], 64, 64, 4
    $region13: #{tpu_custom_call.1} parent=1 // pred_fallthru
      _
    // Predicated region
    $region14: #{tpu_custom_call.1} parent=1 // pred_check
      _
    $region15: #{tpu_custom_call.1} parent=1 // pred_check_branch
      %57 = sbr.rel (0) target = $region17
    $region16: #{tpu_custom_call.1} parent=1 // pred_region
      %s59 = ssub.s32 1024, 1024
      %60 = vsyncadd [#allocation9], %s59
      %s61 = sshll.u32 [#allocation8], 4
      %s62 = int_to_ptr.vmem [resolvable:$true] %s61
      %67 = dma.hbm_to_vmem [thread:$0]  %s3, 1024, %s62, [#allocation9], 64, 64, 4
    $region17: #{tpu_custom_call.1} parent=1 // pred_fallthru
      _
    // Predicated region
    $region18: #{tpu_custom_call.1} parent=1 // pred_check
      _
    $region19: #{tpu_custom_call.1} parent=1 // pred_check_branch
      %69 = sbr.rel (0) target = $region21
    $region20: #{tpu_custom_call.1} parent=1 // pred_region
      %s71 = ssub.s32 1024, 1024
      %72 = vsyncadd [#allocation9], %s71
      %s73 = sshll.u32 [#allocation10], 4
      %s74 = int_to_ptr.vmem [resolvable:$true] %s73
      %79 = dma.hbm_to_vmem [thread:$0]  %s4, 1024, %s74, [#allocation9], 64, 64, 4
    $region21: #{tpu_custom_call.1} parent=1 // pred_fallthru
      _
    // Predicated region
    $region22: #{tpu_custom_call.1} parent=1 // pred_check
      _
    $region23: #{tpu_custom_call.1} parent=1 // pred_check_branch
      %81 = sbr.rel (0) target = $region25
    $region24: #{tpu_custom_call.1} parent=1 // pred_region
      %s83 = ssub.s32 2048, 2048
      %84 = vsyncadd [#allocation12], %s83
      %s85 = sshll.u32 [#allocation11], 4
      %s86 = int_to_ptr.vmem [resolvable:$true] %s85
      %91 = dma.hbm_to_vmem [thread:$0]  %s5, 2048, %s86, [#allocation12], 128, 128, 8
    $region25: #{tpu_custom_call.1} parent=1 // pred_fallthru
      _
    // Predicated region
    $region26: #{tpu_custom_call.1} parent=1 // pred_check
      _
    $region27: #{tpu_custom_call.1} parent=1 // pred_check_branch
      %93 = sbr.rel (0) target = $region29
    $region28: #{tpu_custom_call.1} parent=1 // pred_region
      %s95 = ssub.s32 1024, 1024
      %96 = vsyncadd [#allocation12], %s95
      %s97 = sshll.u32 [#allocation13], 4
      %s98 = int_to_ptr.vmem [resolvable:$true] %s97
      %103 = dma.hbm_to_vmem [thread:$0]  %s6, 1024, %s98, [#allocation12], 64, 64, 4
    $region29: #{tpu_custom_call.1} parent=1 // pred_fallthru
      _
    // Predicated region
    $region30: #{tpu_custom_call.1} parent=1 // pred_check
      _
    $region31: #{tpu_custom_call.1} parent=1 // pred_check_branch
      %105 = sbr.rel (0) target = $region33
    $region32: #{tpu_custom_call.1} parent=1 // pred_region
      %s107 = ssub.s32 2048, 2048
      %108 = vsyncadd [#allocation15], %s107
      %s109 = sshll.u32 [#allocation14], 4
      %s110 = int_to_ptr.vmem [resolvable:$true] %s109
      %115 = dma.hbm_to_vmem [thread:$0]  %s7, 2048, %s110, [#allocation15], 128, 128, 8
    $region33: #{tpu_custom_call.1} parent=1 // pred_fallthru
      _
    // Predicated region
    $region34: #{tpu_custom_call.1} parent=1 // pred_check
      _
    $region35: #{tpu_custom_call.1} parent=1 // pred_check_branch
      %117 = sbr.rel (0) target = $region37
    $region36: #{tpu_custom_call.1} parent=1 // pred_region
      %s119 = ssub.s32 2048, 2048
      %120 = vsyncadd [#allocation15], %s119
      %s121 = sshll.u32 [#allocation16], 4
      %s122 = int_to_ptr.vmem [resolvable:$true] %s121
      %127 = dma.hbm_to_vmem [thread:$0]  %s8, 2048, %s122, [#allocation15], 128, 128, 8
    $region37: #{tpu_custom_call.1} parent=1 // pred_fallthru
      _
    // Predicated region
    $region38: #{tpu_custom_call.1} parent=1 // pred_check
      _
    $region39: #{tpu_custom_call.1} parent=1 // pred_check_branch
      %129 = sbr.rel (0) target = $region41
    $region40: #{tpu_custom_call.1} parent=1 // pred_region
      %130 = dma.done [#allocation3], 2048
    $region41: #{tpu_custom_call.1} parent=1 // pred_fallthru
      _
    // Predicated region
    $region42: #{tpu_custom_call.1} parent=1 // pred_check
      _
    $region43: #{tpu_custom_call.1} parent=1 // pred_check_branch
      %132 = sbr.rel (0) target = $region45
    $region44: #{tpu_custom_call.1} parent=1 // pred_region
      %133 = dma.done [#allocation6], 2048
    $region45: #{tpu_custom_call.1} parent=1 // pred_fallthru
      _
    // Predicated region
    $region46: #{tpu_custom_call.1} parent=1 // pred_check
      _
    $region47: #{tpu_custom_call.1} parent=1 // pred_check_branch
      %135 = sbr.rel (0) target = $region49
    $region48: #{tpu_custom_call.1} parent=1 // pred_region
      %136 = dma.done [#allocation6], 1024
    $region49: #{tpu_custom_call.1} parent=1 // pred_fallthru
      _
    // Predicated region
    $region50: #{tpu_custom_call.1} parent=1 // pred_check
      _
    $region51: #{tpu_custom_call.1} parent=1 // pred_check_branch
      %138 = sbr.rel (0) target = $region53
    $region52: #{tpu_custom_call.1} parent=1 // pred_region
      %139 = dma.done [#allocation9], 1024
    $region53: #{tpu_custom_call.1} parent=1 // pred_fallthru
      _
    // Predicated region
    $region54: #{tpu_custom_call.1} parent=1 // pred_check
      _
    $region55: #{tpu_custom_call.1} parent=1 // pred_check_branch
      %141 = sbr.rel (0) target = $region57
    $region56: #{tpu_custom_call.1} parent=1 // pred_region
      %142 = dma.done [#allocation9], 1024
    $region57: #{tpu_custom_call.1} parent=1 // pred_fallthru
      _
    // Predicated region
    $region58: #{tpu_custom_call.1} parent=1 // pred_check
      _
    $region59: #{tpu_custom_call.1} parent=1 // pred_check_branch
      %144 = sbr.rel (0) target = $region61
    $region60: #{tpu_custom_call.1} parent=1 // pred_region
      %145 = dma.done [#allocation12], 2048
    $region61: #{tpu_custom_call.1} parent=1 // pred_fallthru
      _
    // Predicated region
    $region62: #{tpu_custom_call.1} parent=1 // pred_check
      _
    $region63: #{tpu_custom_call.1} parent=1 // pred_check_branch
      %147 = sbr.rel (0) target = $region65
    $region64: #{tpu_custom_call.1} parent=1 // pred_region
      %148 = dma.done [#allocation12], 1024
    $region65: #{tpu_custom_call.1} parent=1 // pred_fallthru
      _
    // Predicated region
    $region66: #{tpu_custom_call.1} parent=1 // pred_check
      _
    $region67: #{tpu_custom_call.1} parent=1 // pred_check_branch
      %150 = sbr.rel (0) target = $region69
    $region68: #{tpu_custom_call.1} parent=1 // pred_region
      %151 = dma.done [#allocation15], 2048
    $region69: #{tpu_custom_call.1} parent=1 // pred_fallthru
      _
    // Predicated region
    $region70: #{tpu_custom_call.1} parent=1 // pred_check
      _
    $region71: #{tpu_custom_call.1} parent=1 // pred_check_branch
      %153 = sbr.rel (0) target = $region73
    $region72: #{tpu_custom_call.1} parent=1 // pred_region
      %154 = dma.done [#allocation15], 2048
    $region73: #{tpu_custom_call.1} parent=1 // pred_fallthru
      _
    %v156 = vld [vmem:[#allocation2] sm:$0xff]
    %v157 = vld [vmem:[#allocation2 + $0x8] sm:$0xff]
    %v158 = vld [vmem:[#allocation2 + $0x10] sm:$0xff]
    %v159 = vld [vmem:[#allocation2 + $0x18] sm:$0xff]
    %v160 = vld [vmem:[#allocation2 + $0x20] sm:$0xff]
    %v161 = vld [vmem:[#allocation2 + $0x28] sm:$0xff]
    %v162 = vld [vmem:[#allocation2 + $0x30] sm:$0xff]
    %v163 = vld [vmem:[#allocation2 + $0x38] sm:$0xff]
    %v164 = vld [vmem:[#allocation2 + $0x40] sm:$0xff]
    %v165 = vld [vmem:[#allocation2 + $0x48] sm:$0xff]
    %v166 = vld [vmem:[#allocation2 + $0x50] sm:$0xff]
    %v167 = vld [vmem:[#allocation2 + $0x58] sm:$0xff]
    %v168 = vld [vmem:[#allocation2 + $0x60] sm:$0xff]
    %v169 = vld [vmem:[#allocation2 + $0x68] sm:$0xff]
    %v170 = vld [vmem:[#allocation2 + $0x70] sm:$0xff]
    %v171 = vld [vmem:[#allocation2 + $0x78] sm:$0xff]
    %v172 = vld [vmem:[#allocation5] sm:$0xff]
    %v173 = vld [vmem:[#allocation5 + $0x8] sm:$0xff]
    %v174 = vld [vmem:[#allocation5 + $0x10] sm:$0xff]
    %v175 = vld [vmem:[#allocation5 + $0x18] sm:$0xff]
    %v176 = vld [vmem:[#allocation5 + $0x20] sm:$0xff]
    %v177 = vld [vmem:[#allocation5 + $0x28] sm:$0xff]
    %v178 = vld [vmem:[#allocation5 + $0x30] sm:$0xff]
    %v179 = vld [vmem:[#allocation5 + $0x38] sm:$0xff]
    %v180 = vld [vmem:[#allocation5 + $0x40] sm:$0xff]
    %v181 = vld [vmem:[#allocation5 + $0x48] sm:$0xff]
    %v182 = vld [vmem:[#allocation5 + $0x50] sm:$0xff]
    %v183 = vld [vmem:[#allocation5 + $0x58] sm:$0xff]
    %v184 = vld [vmem:[#allocation5 + $0x60] sm:$0xff]
    %v185 = vld [vmem:[#allocation5 + $0x68] sm:$0xff]
    %v186 = vld [vmem:[#allocation5 + $0x70] sm:$0xff]
    %v187 = vld [vmem:[#allocation5 + $0x78] sm:$0xff]
    %v188 = vld [vmem:[#allocation7] sm:$0xf]
    %v189 = vld [vmem:[#allocation7 + $0x4] sm:$0xf]
    %v190 = vld [vmem:[#allocation7 + $0x8] sm:$0xf]
    %v191 = vld [vmem:[#allocation7 + $0xc] sm:$0xf]
    %v192 = vld [vmem:[#allocation7 + $0x10] sm:$0xf]
    %v193 = vld [vmem:[#allocation7 + $0x14] sm:$0xf]
    %v194 = vld [vmem:[#allocation7 + $0x18] sm:$0xf]
    %v195 = vld [vmem:[#allocation7 + $0x1c] sm:$0xf]
    %v196 = vld [vmem:[#allocation7 + $0x20] sm:$0xf]
    %v197 = vld [vmem:[#allocation7 + $0x24] sm:$0xf]
    %v198 = vld [vmem:[#allocation7 + $0x28] sm:$0xf]
    %v199 = vld [vmem:[#allocation7 + $0x2c] sm:$0xf]
    %v200 = vld [vmem:[#allocation7 + $0x30] sm:$0xf]
    %v201 = vld [vmem:[#allocation7 + $0x34] sm:$0xf]
    %v202 = vld [vmem:[#allocation7 + $0x38] sm:$0xf]
    %v203 = vld [vmem:[#allocation7 + $0x3c] sm:$0xf]
    %v204 = vld [vmem:[#allocation8] sm:$0xf]
    %v205 = vld [vmem:[#allocation8 + $0x4] sm:$0xf]
    %v206 = vld [vmem:[#allocation8 + $0x8] sm:$0xf]
    %v207 = vld [vmem:[#allocation8 + $0xc] sm:$0xf]
    %v208 = vld [vmem:[#allocation8 + $0x10] sm:$0xf]
    %v209 = vld [vmem:[#allocation8 + $0x14] sm:$0xf]
    %v210 = vld [vmem:[#allocation8 + $0x18] sm:$0xf]
    %v211 = vld [vmem:[#allocation8 + $0x1c] sm:$0xf]
    %v212 = vld [vmem:[#allocation8 + $0x20] sm:$0xf]
    %v213 = vld [vmem:[#allocation8 + $0x24] sm:$0xf]
    %v214 = vld [vmem:[#allocation8 + $0x28] sm:$0xf]
    %v215 = vld [vmem:[#allocation8 + $0x2c] sm:$0xf]
    %v216 = vld [vmem:[#allocation8 + $0x30] sm:$0xf]
    %v217 = vld [vmem:[#allocation8 + $0x34] sm:$0xf]
    %v218 = vld [vmem:[#allocation8 + $0x38] sm:$0xf]
    %v219 = vld [vmem:[#allocation8 + $0x3c] sm:$0xf]
    %v220 = vld [vmem:[#allocation10] sm:$0xf]
    %v221 = vld [vmem:[#allocation10 + $0x4] sm:$0xf]
    %v222 = vld [vmem:[#allocation10 + $0x8] sm:$0xf]
    %v223 = vld [vmem:[#allocation10 + $0xc] sm:$0xf]
    %v224 = vld [vmem:[#allocation10 + $0x10] sm:$0xf]
    %v225 = vld [vmem:[#allocation10 + $0x14] sm:$0xf]
    %v226 = vld [vmem:[#allocation10 + $0x18] sm:$0xf]
    %v227 = vld [vmem:[#allocation10 + $0x1c] sm:$0xf]
    %v228 = vld [vmem:[#allocation10 + $0x20] sm:$0xf]
    %v229 = vld [vmem:[#allocation10 + $0x24] sm:$0xf]
    %v230 = vld [vmem:[#allocation10 + $0x28] sm:$0xf]
    %v231 = vld [vmem:[#allocation10 + $0x2c] sm:$0xf]
    %v232 = vld [vmem:[#allocation10 + $0x30] sm:$0xf]
    %v233 = vld [vmem:[#allocation10 + $0x34] sm:$0xf]
    %v234 = vld [vmem:[#allocation10 + $0x38] sm:$0xf]
    %v235 = vld [vmem:[#allocation10 + $0x3c] sm:$0xf]
    %v236 = vld [vmem:[#allocation11] sm:$0xff]
    %v237 = vld [vmem:[#allocation11 + $0x8] sm:$0xff]
    %v238 = vld [vmem:[#allocation11 + $0x10] sm:$0xff]
    %v239 = vld [vmem:[#allocation11 + $0x18] sm:$0xff]
    %v240 = vld [vmem:[#allocation11 + $0x20] sm:$0xff]
    %v241 = vld [vmem:[#allocation11 + $0x28] sm:$0xff]
    %v242 = vld [vmem:[#allocation11 + $0x30] sm:$0xff]
    %v243 = vld [vmem:[#allocation11 + $0x38] sm:$0xff]
    %v244 = vld [vmem:[#allocation11 + $0x40] sm:$0xff]
    %v245 = vld [vmem:[#allocation11 + $0x48] sm:$0xff]
    %v246 = vld [vmem:[#allocation11 + $0x50] sm:$0xff]
    %v247 = vld [vmem:[#allocation11 + $0x58] sm:$0xff]
    %v248 = vld [vmem:[#allocation11 + $0x60] sm:$0xff]
    %v249 = vld [vmem:[#allocation11 + $0x68] sm:$0xff]
    %v250 = vld [vmem:[#allocation11 + $0x70] sm:$0xff]
    %v251 = vld [vmem:[#allocation11 + $0x78] sm:$0xff]
    %v252 = vld [vmem:[#allocation13] sm:$0xf]
    %v253 = vld [vmem:[#allocation13 + $0x4] sm:$0xf]
    %v254 = vld [vmem:[#allocation13 + $0x8] sm:$0xf]
    %v255 = vld [vmem:[#allocation13 + $0xc] sm:$0xf]
    %v256 = vld [vmem:[#allocation13 + $0x10] sm:$0xf]
    %v257 = vld [vmem:[#allocation13 + $0x14] sm:$0xf]
    %v258 = vld [vmem:[#allocation13 + $0x18] sm:$0xf]
    %v259 = vld [vmem:[#allocation13 + $0x1c] sm:$0xf]
    %v260 = vld [vmem:[#allocation13 + $0x20] sm:$0xf]
    %v261 = vld [vmem:[#allocation13 + $0x24] sm:$0xf]
    %v262 = vld [vmem:[#allocation13 + $0x28] sm:$0xf]
    %v263 = vld [vmem:[#allocation13 + $0x2c] sm:$0xf]
    %v264 = vld [vmem:[#allocation13 + $0x30] sm:$0xf]
    %v265 = vld [vmem:[#allocation13 + $0x34] sm:$0xf]
    %v266 = vld [vmem:[#allocation13 + $0x38] sm:$0xf]
    %v267 = vld [vmem:[#allocation13 + $0x3c] sm:$0xf]
    %v268 = vld [vmem:[#allocation14] sm:$0xff]
    %v269 = vld [vmem:[#allocation14 + $0x8] sm:$0xff]
    %v270 = vld [vmem:[#allocation14 + $0x10] sm:$0xff]
    %v271 = vld [vmem:[#allocation14 + $0x18] sm:$0xff]
    %v272 = vld [vmem:[#allocation14 + $0x20] sm:$0xff]
    %v273 = vld [vmem:[#allocation14 + $0x28] sm:$0xff]
    %v274 = vld [vmem:[#allocation14 + $0x30] sm:$0xff]
    %v275 = vld [vmem:[#allocation14 + $0x38] sm:$0xff]
    %v276 = vld [vmem:[#allocation14 + $0x40] sm:$0xff]
    %v277 = vld [vmem:[#allocation14 + $0x48] sm:$0xff]
    %v278 = vld [vmem:[#allocation14 + $0x50] sm:$0xff]
    %v279 = vld [vmem:[#allocation14 + $0x58] sm:$0xff]
    %v280 = vld [vmem:[#allocation14 + $0x60] sm:$0xff]
    %v281 = vld [vmem:[#allocation14 + $0x68] sm:$0xff]
    %v282 = vld [vmem:[#allocation14 + $0x70] sm:$0xff]
    %v283 = vld [vmem:[#allocation14 + $0x78] sm:$0xff]
    %v284 = vld [vmem:[#allocation16] sm:$0xff]
    %v285 = vld [vmem:[#allocation16 + $0x8] sm:$0xff]
    %v286 = vld [vmem:[#allocation16 + $0x10] sm:$0xff]
    %v287 = vld [vmem:[#allocation16 + $0x18] sm:$0xff]
    %v288 = vld [vmem:[#allocation16 + $0x20] sm:$0xff]
    %v289 = vld [vmem:[#allocation16 + $0x28] sm:$0xff]
    %v290 = vld [vmem:[#allocation16 + $0x30] sm:$0xff]
    %v291 = vld [vmem:[#allocation16 + $0x38] sm:$0xff]
    %v292 = vld [vmem:[#allocation16 + $0x40] sm:$0xff]
    %v293 = vld [vmem:[#allocation16 + $0x48] sm:$0xff]
    %v294 = vld [vmem:[#allocation16 + $0x50] sm:$0xff]
    %v295 = vld [vmem:[#allocation16 + $0x58] sm:$0xff]
    %v296 = vld [vmem:[#allocation16 + $0x60] sm:$0xff]
    %v297 = vld [vmem:[#allocation16 + $0x68] sm:$0xff]
    %v298 = vld [vmem:[#allocation16 + $0x70] sm:$0xff]
    %v299 = vld [vmem:[#allocation16 + $0x78] sm:$0xff]
    %v300 = vpack.c.bf16 %v157, %v156
    %v301 = vpack.c.bf16 %v159, %v158
    %v302 = vpack.c.bf16 %v161, %v160
    %v303 = vpack.c.bf16 %v163, %v162
    %v304 = vpack.c.bf16 %v165, %v164
    %v305 = vpack.c.bf16 %v167, %v166
    %v306 = vpack.c.bf16 %v169, %v168
    %v307 = vpack.c.bf16 %v171, %v170
    %v324 = vunpack.c.l.b16 %v188
    %v325 = vunpack.c.l.b16 %v189
    %v326 = vunpack.c.l.b16 %v190
    %v327 = vunpack.c.l.b16 %v191
    %v328 = vunpack.c.l.b16 %v192
    %v329 = vunpack.c.l.b16 %v193
    %v330 = vunpack.c.l.b16 %v194
    %v331 = vunpack.c.l.b16 %v195
    %v332 = vunpack.c.l.b16 %v196
    %v333 = vunpack.c.l.b16 %v197
    %v334 = vunpack.c.l.b16 %v198
    %v335 = vunpack.c.l.b16 %v199
    %v336 = vunpack.c.l.b16 %v200
    %v337 = vunpack.c.l.b16 %v201
    %v338 = vunpack.c.l.b16 %v202
    %v339 = vunpack.c.l.b16 %v203
    %v340 = vpack.c.b16 %v325, %v324
    %v341 = vpack.c.b16 %v327, %v326
    %v342 = vpack.c.b16 %v329, %v328
    %v343 = vpack.c.b16 %v331, %v330
    %v344 = vpack.c.b16 %v333, %v332
    %v345 = vpack.c.b16 %v335, %v334
    %v346 = vpack.c.b16 %v337, %v336
    %v347 = vpack.c.b16 %v339, %v338
    %356 = vmatprep.subr.bf16.mxu0 0
    %357 = vmatpush1.bf16.msra.mxu0 %v300
    %358 = vmatprep.subr.bf16.mxu0 0
    %359 = vmatpush1.bf16.msra.mxu0 %v301
    %360 = vmatprep.subr.bf16.mxu0 0
    %361 = vmatpush1.bf16.msra.mxu0 %v302
    %362 = vmatprep.subr.bf16.mxu0 0
    %363 = vmatpush1.bf16.msra.mxu0 %v303
    %364 = vmatprep.subr.bf16.mxu0 0
    %365 = vmatpush1.bf16.msra.mxu0 %v304
    %366 = vmatprep.subr.bf16.mxu0 0
    %367 = vmatpush1.bf16.msra.mxu0 %v305
    %368 = vmatprep.subr.bf16.mxu0 0
    %369 = vmatpush1.bf16.msra.mxu0 %v306
    %370 = vmatprep.subr.bf16.mxu0 0
    %371 = vmatpush1.bf16.msra.mxu0 %v307
    %372 = vmatprep.subr.bf16.mxu0 0
    %373 = vmatpush1.bf16.msra.mxu0 0
    %374 = vmatprep.subr.bf16.mxu0 0
    %375 = vmatpush1.bf16.msra.mxu0 0
    %376 = vmatprep.subr.bf16.mxu0 0
    %377 = vmatpush1.bf16.msra.mxu0 0
    %378 = vmatprep.subr.bf16.mxu0 0
    %379 = vmatpush1.bf16.msra.mxu0 0
    %380 = vmatprep.subr.bf16.mxu0 0
    %381 = vmatpush1.bf16.msra.mxu0 0
    %382 = vmatprep.subr.bf16.mxu0 0
    %383 = vmatpush1.bf16.msra.mxu0 0
    %384 = vmatprep.subr.bf16.mxu0 0
    %385 = vmatpush1.bf16.msra.mxu0 0
    %386 = vmatprep.subr.bf16.mxu0 0
    %387 = vmatpush1.bf16.msra.mxu0 0
    %388 = vmatprep.mubr.bf16.mxu0 0
    %389 = vmatmul.mubr.bf16.gmra.mrb[0].mxu0 %v340
    %v390 = vpop.f32.mrb[0].mxu0
    %v391 = vadd.f32 %v172, %v390
    %v392 = vpop.f32.mrb[0].mxu0
    %v393 = vpop.f32.mrb[0].mxu0
    %v394 = vadd.f32 %v173, %v393
    %v395 = vpop.f32.mrb[0].mxu0
    %396 = vmatprep.mubr.bf16.mxu0 0
    %397 = vmatmul.mubr.bf16.gmra.mrb[0].mxu0 %v341
    %v398 = vpop.f32.mrb[0].mxu0
    %v399 = vadd.f32 %v174, %v398
    %v400 = vpop.f32.mrb[0].mxu0
    %v401 = vpop.f32.mrb[0].mxu0
    %v402 = vadd.f32 %v175, %v401
    %v403 = vpop.f32.mrb[0].mxu0
    %404 = vmatprep.mubr.bf16.mxu0 0
    %405 = vmatmul.mubr.bf16.gmra.mrb[0].mxu0 %v342
    %v406 = vpop.f32.mrb[0].mxu0
    %v407 = vadd.f32 %v176, %v406
    %v408 = vpop.f32.mrb[0].mxu0
    %v409 = vpop.f32.mrb[0].mxu0
    %v410 = vadd.f32 %v177, %v409
    %v411 = vpop.f32.mrb[0].mxu0
    %412 = vmatprep.mubr.bf16.mxu0 0
    %413 = vmatmul.mubr.bf16.gmra.mrb[0].mxu0 %v343
    %v414 = vpop.f32.mrb[0].mxu0
    %v415 = vadd.f32 %v178, %v414
    %v416 = vpop.f32.mrb[0].mxu0
    %v417 = vpop.f32.mrb[0].mxu0
    %v418 = vadd.f32 %v179, %v417
    %v419 = vpop.f32.mrb[0].mxu0
    %420 = vmatprep.mubr.bf16.mxu0 0
    %421 = vmatmul.mubr.bf16.gmra.mrb[0].mxu0 %v344
    %v422 = vpop.f32.mrb[0].mxu0
    %v423 = vadd.f32 %v180, %v422
    %v424 = vpop.f32.mrb[0].mxu0
    %v425 = vpop.f32.mrb[0].mxu0
    %v426 = vadd.f32 %v181, %v425
    %v427 = vpop.f32.mrb[0].mxu0
    %428 = vmatprep.mubr.bf16.mxu0 0
    %429 = vmatmul.mubr.bf16.gmra.mrb[0].mxu0 %v345
    %v430 = vpop.f32.mrb[0].mxu0
    %v431 = vadd.f32 %v182, %v430
    %v432 = vpop.f32.mrb[0].mxu0
    %v433 = vpop.f32.mrb[0].mxu0
    %v434 = vadd.f32 %v183, %v433
    %v435 = vpop.f32.mrb[0].mxu0
    %436 = vmatprep.mubr.bf16.mxu0 0
    %437 = vmatmul.mubr.bf16.gmra.mrb[0].mxu0 %v346
    %v438 = vpop.f32.mrb[0].mxu0
    %v439 = vadd.f32 %v184, %v438
    %v440 = vpop.f32.mrb[0].mxu0
    %v441 = vpop.f32.mrb[0].mxu0
    %v442 = vadd.f32 %v185, %v441
    %v443 = vpop.f32.mrb[0].mxu0
    %444 = vmatprep.mubr.bf16.mxu0 0
    %445 = vmatmul.mubr.bf16.gmra.mrb[0].mxu0 %v347
    %v446 = vpop.f32.mrb[0].mxu0
    %v447 = vadd.f32 %v186, %v446
    %v448 = vpop.f32.mrb[0].mxu0
    %v449 = vpop.f32.mrb[0].mxu0
    %v450 = vadd.f32 %v187, %v449
    %v451 = vpop.f32.mrb[0].mxu0
    %452 = vdwg.mxu0
    %453 = vmatprep.subr.mxu0 0.0
    %454 = vmatpush1.msra.mxu0 %v236
    %455 = vmatprep.subr.mxu0 0.0
    %456 = vmatpush1.msra.mxu0 %v237
    %457 = vmatprep.subr.mxu0 0.0
    %458 = vmatpush1.msra.mxu0 %v238
    %459 = vmatprep.subr.mxu0 0.0
    %460 = vmatpush1.msra.mxu0 %v239
    %461 = vmatprep.subr.mxu0 0.0
    %462 = vmatpush1.msra.mxu0 %v240
    %463 = vmatprep.subr.mxu0 0.0
    %464 = vmatpush1.msra.mxu0 %v241
    %465 = vmatprep.subr.mxu0 0.0
    %466 = vmatpush1.msra.mxu0 %v242
    %467 = vmatprep.subr.mxu0 0.0
    %468 = vmatpush1.msra.mxu0 %v243
    %469 = vmatprep.subr.mxu0 0.0
    %470 = vmatpush1.msra.mxu0 %v244
    %471 = vmatprep.subr.mxu0 0.0
    %472 = vmatpush1.msra.mxu0 %v245
    %473 = vmatprep.subr.mxu0 0.0
    %474 = vmatpush1.msra.mxu0 %v246
    %475 = vmatprep.subr.mxu0 0.0
    %476 = vmatpush1.msra.mxu0 %v247
    %477 = vmatprep.subr.mxu0 0.0
    %478 = vmatpush1.msra.mxu0 %v248
    %479 = vmatprep.subr.mxu0 0.0
    %480 = vmatpush1.msra.mxu0 %v249
    %481 = vmatprep.subr.mxu0 0.0
    %482 = vmatpush1.msra.mxu0 %v250
    %483 = vmatprep.subr.mxu0 0.0
    %484 = vmatpush1.msra.mxu0 %v251
    %485 = vmatprep.subr.mxu0 0.0
    %486 = vmatpush1.msra.mxu0 0.0
    %487 = vmatprep.subr.mxu0 0.0
    %488 = vmatpush1.msra.mxu0 0.0
    %489 = vmatprep.subr.mxu0 0.0
    %490 = vmatpush1.msra.mxu0 0.0
    %491 = vmatprep.subr.mxu0 0.0
    %492 = vmatpush1.msra.mxu0 0.0
    %493 = vmatprep.subr.mxu0 0.0
    %494 = vmatpush1.msra.mxu0 0.0
    %495 = vmatprep.subr.mxu0 0.0
    %496 = vmatpush1.msra.mxu0 0.0
    %497 = vmatprep.subr.mxu0 0.0
    %498 = vmatpush1.msra.mxu0 0.0
    %499 = vmatprep.subr.mxu0 0.0
    %500 = vmatpush1.msra.mxu0 0.0
    %501 = vmatprep.subr.mxu0 0.0
    %502 = vmatpush1.msra.mxu0 0.0
    %503 = vmatprep.subr.mxu0 0.0
    %504 = vmatpush1.msra.mxu0 0.0
    %505 = vmatprep.subr.mxu0 0.0
    %506 = vmatpush1.msra.mxu0 0.0
    %507 = vmatprep.subr.mxu0 0.0
    %508 = vmatpush1.msra.mxu0 0.0
    %509 = vmatprep.subr.mxu0 0.0
    %510 = vmatpush1.msra.mxu0 0.0
    %511 = vmatprep.subr.mxu0 0.0
    %512 = vmatpush1.msra.mxu0 0.0
    %513 = vmatprep.subr.mxu0 0.0
    %514 = vmatpush1.msra.mxu0 0.0
    %515 = vmatprep.subr.mxu0 0.0
    %516 = vmatpush1.msra.mxu0 0.0
    %517 = vmatprep.mubr.f32.mxu0 0.0
    %518 = vmatmul.mubr.f32.gmra.mrb[0].mxu0 %v391
    %v519 = vpop.f32.mrb[0].mxu0
    %v520 = vadd.f32 0.0, %v519
    %v521 = vpop.f32.mrb[0].mxu0
    %522 = vmatprep.mubr.f32.mxu0 0.0
    %523 = vmatmul.mubr.f32.gmra.mrb[0].mxu0 %v394
    %v524 = vpop.f32.mrb[0].mxu0
    %v525 = vadd.f32 0.0, %v524
    %v526 = vpop.f32.mrb[0].mxu0
    %527 = vmatprep.mubr.f32.mxu0 0.0
    %528 = vmatmul.mubr.f32.gmra.mrb[0].mxu0 %v399
    %v529 = vpop.f32.mrb[0].mxu0
    %v530 = vadd.f32 0.0, %v529
    %v531 = vpop.f32.mrb[0].mxu0
    %532 = vmatprep.mubr.f32.mxu0 0.0
    %533 = vmatmul.mubr.f32.gmra.mrb[0].mxu0 %v402
    %v534 = vpop.f32.mrb[0].mxu0
    %v535 = vadd.f32 0.0, %v534
    %v536 = vpop.f32.mrb[0].mxu0
    %537 = vmatprep.mubr.f32.mxu0 0.0
    %538 = vmatmul.mubr.f32.gmra.mrb[0].mxu0 %v407
    %v539 = vpop.f32.mrb[0].mxu0
    %v540 = vadd.f32 0.0, %v539
    %v541 = vpop.f32.mrb[0].mxu0
    %542 = vmatprep.mubr.f32.mxu0 0.0
    %543 = vmatmul.mubr.f32.gmra.mrb[0].mxu0 %v410
    %v544 = vpop.f32.mrb[0].mxu0
    %v545 = vadd.f32 0.0, %v544
    %v546 = vpop.f32.mrb[0].mxu0
    %547 = vmatprep.mubr.f32.mxu0 0.0
    %548 = vmatmul.mubr.f32.gmra.mrb[0].mxu0 %v415
    %v549 = vpop.f32.mrb[0].mxu0
    %v550 = vadd.f32 0.0, %v549
    %v551 = vpop.f32.mrb[0].mxu0
    %552 = vmatprep.mubr.f32.mxu0 0.0
    %553 = vmatmul.mubr.f32.gmra.mrb[0].mxu0 %v418
    %v554 = vpop.f32.mrb[0].mxu0
    %v555 = vadd.f32 0.0, %v554
    %v556 = vpop.f32.mrb[0].mxu0
    %557 = vmatprep.mubr.f32.mxu0 0.0
    %558 = vmatmul.mubr.f32.gmra.mrb[0].mxu0 %v423
    %v559 = vpop.f32.mrb[0].mxu0
    %v560 = vadd.f32 0.0, %v559
    %v561 = vpop.f32.mrb[0].mxu0
    %562 = vmatprep.mubr.f32.mxu0 0.0
    %563 = vmatmul.mubr.f32.gmra.mrb[0].mxu0 %v426
    %v564 = vpop.f32.mrb[0].mxu0
    %v565 = vadd.f32 0.0, %v564
    %v566 = vpop.f32.mrb[0].mxu0
    %567 = vmatprep.mubr.f32.mxu0 0.0
    %568 = vmatmul.mubr.f32.gmra.mrb[0].mxu0 %v431
    %v569 = vpop.f32.mrb[0].mxu0
    %v570 = vadd.f32 0.0, %v569
    %v571 = vpop.f32.mrb[0].mxu0
    %572 = vmatprep.mubr.f32.mxu0 0.0
    %573 = vmatmul.mubr.f32.gmra.mrb[0].mxu0 %v434
    %v574 = vpop.f32.mrb[0].mxu0
    %v575 = vadd.f32 0.0, %v574
    %v576 = vpop.f32.mrb[0].mxu0
    %577 = vmatprep.mubr.f32.mxu0 0.0
    %578 = vmatmul.mubr.f32.gmra.mrb[0].mxu0 %v439
    %v579 = vpop.f32.mrb[0].mxu0
    %v580 = vadd.f32 0.0, %v579
    %v581 = vpop.f32.mrb[0].mxu0
    %582 = vmatprep.mubr.f32.mxu0 0.0
    %583 = vmatmul.mubr.f32.gmra.mrb[0].mxu0 %v442
    %v584 = vpop.f32.mrb[0].mxu0
    %v585 = vadd.f32 0.0, %v584
    %v586 = vpop.f32.mrb[0].mxu0
    %587 = vmatprep.mubr.f32.mxu0 0.0
    %588 = vmatmul.mubr.f32.gmra.mrb[0].mxu0 %v447
    %v589 = vpop.f32.mrb[0].mxu0
    %v590 = vadd.f32 0.0, %v589
    %v591 = vpop.f32.mrb[0].mxu0
    %592 = vmatprep.mubr.f32.mxu0 0.0
    %593 = vmatmul.mubr.f32.gmra.mrb[0].mxu0 %v450
    %v594 = vpop.f32.mrb[0].mxu0
    %v595 = vadd.f32 0.0, %v594
    %v596 = vpop.f32.mrb[0].mxu0
    %597 = vdwg.mxu0
    %v598 = vmax.f32 %v520, 0.0
    %v599 = vmax.f32 %v525, 0.0
    %v600 = vmax.f32 %v530, 0.0
    %v601 = vmax.f32 %v535, 0.0
    %v602 = vmax.f32 %v540, 0.0
    %v603 = vmax.f32 %v545, 0.0
    %v604 = vmax.f32 %v550, 0.0
    %v605 = vmax.f32 %v555, 0.0
    %v606 = vmax.f32 %v560, 0.0
    %v607 = vmax.f32 %v565, 0.0
    %v608 = vmax.f32 %v570, 0.0
    %v609 = vmax.f32 %v575, 0.0
    %v610 = vmax.f32 %v580, 0.0
    %v611 = vmax.f32 %v585, 0.0
    %v612 = vmax.f32 %v590, 0.0
    %v613 = vmax.f32 %v595, 0.0
    %v614 = vpack.c.bf16 %v599, %v598
    %v615 = vpack.c.bf16 %v601, %v600
    %v616 = vpack.c.bf16 %v603, %v602
    %v617 = vpack.c.bf16 %v605, %v604
    %v618 = vpack.c.bf16 %v607, %v606
    %v619 = vpack.c.bf16 %v609, %v608
    %v620 = vpack.c.bf16 %v611, %v610
    %v621 = vpack.c.bf16 %v613, %v612
    %v638 = vunpack.c.l.b16 %v204
    %v639 = vunpack.c.l.b16 %v205
    %v640 = vunpack.c.l.b16 %v206
    %v641 = vunpack.c.l.b16 %v207
    %v642 = vunpack.c.l.b16 %v208
    %v643 = vunpack.c.l.b16 %v209
    %v644 = vunpack.c.l.b16 %v210
    %v645 = vunpack.c.l.b16 %v211
    %v646 = vunpack.c.l.b16 %v212
    %v647 = vunpack.c.l.b16 %v213
    %v648 = vunpack.c.l.b16 %v214
    %v649 = vunpack.c.l.b16 %v215
    %v650 = vunpack.c.l.b16 %v216
    %v651 = vunpack.c.l.b16 %v217
    %v652 = vunpack.c.l.b16 %v218
    %v653 = vunpack.c.l.b16 %v219
    %v654 = vpack.c.b16 %v639, %v638
    %v655 = vpack.c.b16 %v641, %v640
    %v656 = vpack.c.b16 %v643, %v642
    %v657 = vpack.c.b16 %v645, %v644
    %v658 = vpack.c.b16 %v647, %v646
    %v659 = vpack.c.b16 %v649, %v648
    %v660 = vpack.c.b16 %v651, %v650
    %v661 = vpack.c.b16 %v653, %v652
    %670 = vmatprep.subr.bf16.mxu0 0
    %671 = vmatpush1.bf16.msra.mxu0 %v614
    %672 = vmatprep.subr.bf16.mxu0 0
    %673 = vmatpush1.bf16.msra.mxu0 %v615
    %674 = vmatprep.subr.bf16.mxu0 0
    %675 = vmatpush1.bf16.msra.mxu0 %v616
    %676 = vmatprep.subr.bf16.mxu0 0
    %677 = vmatpush1.bf16.msra.mxu0 %v617
    %678 = vmatprep.subr.bf16.mxu0 0
    %679 = vmatpush1.bf16.msra.mxu0 %v618
    %680 = vmatprep.subr.bf16.mxu0 0
    %681 = vmatpush1.bf16.msra.mxu0 %v619
    %682 = vmatprep.subr.bf16.mxu0 0
    %683 = vmatpush1.bf16.msra.mxu0 %v620
    %684 = vmatprep.subr.bf16.mxu0 0
    %685 = vmatpush1.bf16.msra.mxu0 %v621
    %686 = vmatprep.subr.bf16.mxu0 0
    %687 = vmatpush1.bf16.msra.mxu0 0
    %688 = vmatprep.subr.bf16.mxu0 0
    %689 = vmatpush1.bf16.msra.mxu0 0
    %690 = vmatprep.subr.bf16.mxu0 0
    %691 = vmatpush1.bf16.msra.mxu0 0
    %692 = vmatprep.subr.bf16.mxu0 0
    %693 = vmatpush1.bf16.msra.mxu0 0
    %694 = vmatprep.subr.bf16.mxu0 0
    %695 = vmatpush1.bf16.msra.mxu0 0
    %696 = vmatprep.subr.bf16.mxu0 0
    %697 = vmatpush1.bf16.msra.mxu0 0
    %698 = vmatprep.subr.bf16.mxu0 0
    %699 = vmatpush1.bf16.msra.mxu0 0
    %700 = vmatprep.subr.bf16.mxu0 0
    %701 = vmatpush1.bf16.msra.mxu0 0
    %702 = vmatprep.mubr.bf16.mxu0 0
    %703 = vmatmul.mubr.bf16.gmra.mrb[0].mxu0 %v654
    %v704 = vpop.f32.mrb[0].mxu0
    %v705 = vadd.f32 0.0, %v704
    %v706 = vpop.f32.mrb[0].mxu0
    %v707 = vpop.f32.mrb[0].mxu0
    %v708 = vadd.f32 0.0, %v707
    %v709 = vpop.f32.mrb[0].mxu0
    %710 = vmatprep.mubr.bf16.mxu0 0
    %711 = vmatmul.mubr.bf16.gmra.mrb[0].mxu0 %v655
    %v712 = vpop.f32.mrb[0].mxu0
    %v713 = vadd.f32 0.0, %v712
    %v714 = vpop.f32.mrb[0].mxu0
    %v715 = vpop.f32.mrb[0].mxu0
    %v716 = vadd.f32 0.0, %v715
    %v717 = vpop.f32.mrb[0].mxu0
    %718 = vmatprep.mubr.bf16.mxu0 0
    %719 = vmatmul.mubr.bf16.gmra.mrb[0].mxu0 %v656
    %v720 = vpop.f32.mrb[0].mxu0
    %v721 = vadd.f32 0.0, %v720
    %v722 = vpop.f32.mrb[0].mxu0
    %v723 = vpop.f32.mrb[0].mxu0
    %v724 = vadd.f32 0.0, %v723
    %v725 = vpop.f32.mrb[0].mxu0
    %726 = vmatprep.mubr.bf16.mxu0 0
    %727 = vmatmul.mubr.bf16.gmra.mrb[0].mxu0 %v657
    %v728 = vpop.f32.mrb[0].mxu0
    %v729 = vadd.f32 0.0, %v728
    %v730 = vpop.f32.mrb[0].mxu0
    %v731 = vpop.f32.mrb[0].mxu0
    %v732 = vadd.f32 0.0, %v731
    %v733 = vpop.f32.mrb[0].mxu0
    %734 = vmatprep.mubr.bf16.mxu0 0
    %735 = vmatmul.mubr.bf16.gmra.mrb[0].mxu0 %v658
    %v736 = vpop.f32.mrb[0].mxu0
    %v737 = vadd.f32 0.0, %v736
    %v738 = vpop.f32.mrb[0].mxu0
    %v739 = vpop.f32.mrb[0].mxu0
    %v740 = vadd.f32 0.0, %v739
    %v741 = vpop.f32.mrb[0].mxu0
    %742 = vmatprep.mubr.bf16.mxu0 0
    %743 = vmatmul.mubr.bf16.gmra.mrb[0].mxu0 %v659
    %v744 = vpop.f32.mrb[0].mxu0
    %v745 = vadd.f32 0.0, %v744
    %v746 = vpop.f32.mrb[0].mxu0
    %v747 = vpop.f32.mrb[0].mxu0
    %v748 = vadd.f32 0.0, %v747
    %v749 = vpop.f32.mrb[0].mxu0
    %750 = vmatprep.mubr.bf16.mxu0 0
    %751 = vmatmul.mubr.bf16.gmra.mrb[0].mxu0 %v660
    %v752 = vpop.f32.mrb[0].mxu0
    %v753 = vadd.f32 0.0, %v752
    %v754 = vpop.f32.mrb[0].mxu0
    %v755 = vpop.f32.mrb[0].mxu0
    %v756 = vadd.f32 0.0, %v755
    %v757 = vpop.f32.mrb[0].mxu0
    %758 = vmatprep.mubr.bf16.mxu0 0
    %759 = vmatmul.mubr.bf16.gmra.mrb[0].mxu0 %v661
    %v760 = vpop.f32.mrb[0].mxu0
    %v761 = vadd.f32 0.0, %v760
    %v762 = vpop.f32.mrb[0].mxu0
    %v763 = vpop.f32.mrb[0].mxu0
    %v764 = vadd.f32 0.0, %v763
    %v765 = vpop.f32.mrb[0].mxu0
    %766 = vdwg.mxu0
    %v767 = vpack.c.bf16 %v708, %v705
    %v768 = vpack.c.bf16 %v716, %v713
    %v769 = vpack.c.bf16 %v724, %v721
    %v770 = vpack.c.bf16 %v732, %v729
    %v771 = vpack.c.bf16 %v740, %v737
    %v772 = vpack.c.bf16 %v748, %v745
    %v773 = vpack.c.bf16 %v756, %v753
    %v774 = vpack.c.bf16 %v764, %v761
    %v791 = vunpack.c.l.b16 %v252
    %v792 = vunpack.c.l.b16 %v253
    %v793 = vunpack.c.l.b16 %v254
    %v794 = vunpack.c.l.b16 %v255
    %v795 = vunpack.c.l.b16 %v256
    %v796 = vunpack.c.l.b16 %v257
    %v797 = vunpack.c.l.b16 %v258
    %v798 = vunpack.c.l.b16 %v259
    %v799 = vunpack.c.l.b16 %v260
    %v800 = vunpack.c.l.b16 %v261
    %v801 = vunpack.c.l.b16 %v262
    %v802 = vunpack.c.l.b16 %v263
    %v803 = vunpack.c.l.b16 %v264
    %v804 = vunpack.c.l.b16 %v265
    %v805 = vunpack.c.l.b16 %v266
    %v806 = vunpack.c.l.b16 %v267
    %v807 = vpack.c.b16 %v792, %v791
    %v808 = vpack.c.b16 %v794, %v793
    %v809 = vpack.c.b16 %v796, %v795
    %v810 = vpack.c.b16 %v798, %v797
    %v811 = vpack.c.b16 %v800, %v799
    %v812 = vpack.c.b16 %v802, %v801
    %v813 = vpack.c.b16 %v804, %v803
    %v814 = vpack.c.b16 %v806, %v805
    %823 = vmatprep.subr.bf16.mxu0 0
    %824 = vmatpush1.bf16.msra.mxu0 %v807
    %825 = vmatprep.subr.bf16.mxu0 0
    %826 = vmatpush1.bf16.msra.mxu0 %v808
    %827 = vmatprep.subr.bf16.mxu0 0
    %828 = vmatpush1.bf16.msra.mxu0 %v809
    %829 = vmatprep.subr.bf16.mxu0 0
    %830 = vmatpush1.bf16.msra.mxu0 %v810
    %831 = vmatprep.subr.bf16.mxu0 0
    %832 = vmatpush1.bf16.msra.mxu0 %v811
    %833 = vmatprep.subr.bf16.mxu0 0
    %834 = vmatpush1.bf16.msra.mxu0 %v812
    %835 = vmatprep.subr.bf16.mxu0 0
    %836 = vmatpush1.bf16.msra.mxu0 %v813
    %837 = vmatprep.subr.bf16.mxu0 0
    %838 = vmatpush1.bf16.msra.mxu0 %v814
    %839 = vmatprep.subr.bf16.mxu0 0
    %840 = vmatpush1.bf16.msra.mxu0 0
    %841 = vmatprep.subr.bf16.mxu0 0
    %842 = vmatpush1.bf16.msra.mxu0 0
    %843 = vmatprep.subr.bf16.mxu0 0
    %844 = vmatpush1.bf16.msra.mxu0 0
    %845 = vmatprep.subr.bf16.mxu0 0
    %846 = vmatpush1.bf16.msra.mxu0 0
    %847 = vmatprep.subr.bf16.mxu0 0
    %848 = vmatpush1.bf16.msra.mxu0 0
    %849 = vmatprep.subr.bf16.mxu0 0
    %850 = vmatpush1.bf16.msra.mxu0 0
    %851 = vmatprep.subr.bf16.mxu0 0
    %852 = vmatpush1.bf16.msra.mxu0 0
    %853 = vmatprep.subr.bf16.mxu0 0
    %854 = vmatpush1.bf16.msra.mxu0 0
    %855 = vmatprep.mubr.bf16.mxu0 0
    %856 = vmatmul.mubr.bf16.gmra.mrb[0].mxu0 %v767
    %v857 = vpop.f32.mrb[0].mxu0
    %v858 = vadd.f32 0.0, %v857
    %v859 = vpop.f32.mrb[0].mxu0
    %v860 = vpop.f32.mrb[0].mxu0
    %v861 = vadd.f32 0.0, %v860
    %v862 = vpop.f32.mrb[0].mxu0
    %863 = vmatprep.mubr.bf16.mxu0 0
    %864 = vmatmul.mubr.bf16.gmra.mrb[0].mxu0 %v768
    %v865 = vpop.f32.mrb[0].mxu0
    %v866 = vadd.f32 0.0, %v865
    %v867 = vpop.f32.mrb[0].mxu0
    %v868 = vpop.f32.mrb[0].mxu0
    %v869 = vadd.f32 0.0, %v868
    %v870 = vpop.f32.mrb[0].mxu0
    %871 = vmatprep.mubr.bf16.mxu0 0
    %872 = vmatmul.mubr.bf16.gmra.mrb[0].mxu0 %v769
    %v873 = vpop.f32.mrb[0].mxu0
    %v874 = vadd.f32 0.0, %v873
    %v875 = vpop.f32.mrb[0].mxu0
    %v876 = vpop.f32.mrb[0].mxu0
    %v877 = vadd.f32 0.0, %v876
    %v878 = vpop.f32.mrb[0].mxu0
    %879 = vmatprep.mubr.bf16.mxu0 0
    %880 = vmatmul.mubr.bf16.gmra.mrb[0].mxu0 %v770
    %v881 = vpop.f32.mrb[0].mxu0
    %v882 = vadd.f32 0.0, %v881
    %v883 = vpop.f32.mrb[0].mxu0
    %v884 = vpop.f32.mrb[0].mxu0
    %v885 = vadd.f32 0.0, %v884
    %v886 = vpop.f32.mrb[0].mxu0
    %887 = vmatprep.mubr.bf16.mxu0 0
    %888 = vmatmul.mubr.bf16.gmra.mrb[0].mxu0 %v771
    %v889 = vpop.f32.mrb[0].mxu0
    %v890 = vadd.f32 0.0, %v889
    %v891 = vpop.f32.mrb[0].mxu0
    %v892 = vpop.f32.mrb[0].mxu0
    %v893 = vadd.f32 0.0, %v892
    %v894 = vpop.f32.mrb[0].mxu0
    %895 = vmatprep.mubr.bf16.mxu0 0
    %896 = vmatmul.mubr.bf16.gmra.mrb[0].mxu0 %v772
    %v897 = vpop.f32.mrb[0].mxu0
    %v898 = vadd.f32 0.0, %v897
    %v899 = vpop.f32.mrb[0].mxu0
    %v900 = vpop.f32.mrb[0].mxu0
    %v901 = vadd.f32 0.0, %v900
    %v902 = vpop.f32.mrb[0].mxu0
    %903 = vmatprep.mubr.bf16.mxu0 0
    %904 = vmatmul.mubr.bf16.gmra.mrb[0].mxu0 %v773
    %v905 = vpop.f32.mrb[0].mxu0
    %v906 = vadd.f32 0.0, %v905
    %v907 = vpop.f32.mrb[0].mxu0
    %v908 = vpop.f32.mrb[0].mxu0
    %v909 = vadd.f32 0.0, %v908
    %v910 = vpop.f32.mrb[0].mxu0
    %911 = vmatprep.mubr.bf16.mxu0 0
    %912 = vmatmul.mubr.bf16.gmra.mrb[0].mxu0 %v774
    %v913 = vpop.f32.mrb[0].mxu0
    %v914 = vadd.f32 0.0, %v913
    %v915 = vpop.f32.mrb[0].mxu0
    %v916 = vpop.f32.mrb[0].mxu0
    %v917 = vadd.f32 0.0, %v916
    %v918 = vpop.f32.mrb[0].mxu0
    %919 = vdwg.mxu0
    %v920 = vadd.f32 %v598, %v858
    %v921 = vadd.f32 %v599, %v861
    %v922 = vadd.f32 %v600, %v866
    %v923 = vadd.f32 %v601, %v869
    %v924 = vadd.f32 %v602, %v874
    %v925 = vadd.f32 %v603, %v877
    %v926 = vadd.f32 %v604, %v882
    %v927 = vadd.f32 %v605, %v885
    %v928 = vadd.f32 %v606, %v890
    %v929 = vadd.f32 %v607, %v893
    %v930 = vadd.f32 %v608, %v898
    %v931 = vadd.f32 %v609, %v901
    %v932 = vadd.f32 %v610, %v906
    %v933 = vadd.f32 %v611, %v909
    %v934 = vadd.f32 %v612, %v914
    %v935 = vadd.f32 %v613, %v917
    %v936 = vmax.f32 %v920, 0.0
    %v937 = vmax.f32 %v921, 0.0
    %v938 = vmax.f32 %v922, 0.0
    %v939 = vmax.f32 %v923, 0.0
    %v940 = vmax.f32 %v924, 0.0
    %v941 = vmax.f32 %v925, 0.0
    %v942 = vmax.f32 %v926, 0.0
    %v943 = vmax.f32 %v927, 0.0
    %v944 = vmax.f32 %v928, 0.0
    %v945 = vmax.f32 %v929, 0.0
    %v946 = vmax.f32 %v930, 0.0
    %v947 = vmax.f32 %v931, 0.0
    %v948 = vmax.f32 %v932, 0.0
    %v949 = vmax.f32 %v933, 0.0
    %v950 = vmax.f32 %v934, 0.0
    %v951 = vmax.f32 %v935, 0.0
    %v952 = vpack.c.bf16 %v937, %v936
    %v953 = vpack.c.bf16 %v939, %v938
    %v954 = vpack.c.bf16 %v941, %v940
    %v955 = vpack.c.bf16 %v943, %v942
    %v956 = vpack.c.bf16 %v945, %v944
    %v957 = vpack.c.bf16 %v947, %v946
    %v958 = vpack.c.bf16 %v949, %v948
    %v959 = vpack.c.bf16 %v951, %v950
    %960 = vmatprep.subr.bf16.mxu0 0
    %961 = vmatpush1.bf16.msra.mxu0 %v952
    %962 = vmatprep.subr.bf16.mxu0 0
    %963 = vmatpush1.bf16.msra.mxu0 %v953
    %964 = vmatprep.subr.bf16.mxu0 0
    %965 = vmatpush1.bf16.msra.mxu0 %v954
    %966 = vmatprep.subr.bf16.mxu0 0
    %967 = vmatpush1.bf16.msra.mxu0 %v955
    %968 = vmatprep.subr.bf16.mxu0 0
    %969 = vmatpush1.bf16.msra.mxu0 %v956
    %970 = vmatprep.subr.bf16.mxu0 0
    %971 = vmatpush1.bf16.msra.mxu0 %v957
    %972 = vmatprep.subr.bf16.mxu0 0
    %973 = vmatpush1.bf16.msra.mxu0 %v958
    %974 = vmatprep.subr.bf16.mxu0 0
    %975 = vmatpush1.bf16.msra.mxu0 %v959
    %976 = vmatprep.subr.bf16.mxu0 0
    %977 = vmatpush1.bf16.msra.mxu0 0
    %978 = vmatprep.subr.bf16.mxu0 0
    %979 = vmatpush1.bf16.msra.mxu0 0
    %980 = vmatprep.subr.bf16.mxu0 0
    %981 = vmatpush1.bf16.msra.mxu0 0
    %982 = vmatprep.subr.bf16.mxu0 0
    %983 = vmatpush1.bf16.msra.mxu0 0
    %984 = vmatprep.subr.bf16.mxu0 0
    %985 = vmatpush1.bf16.msra.mxu0 0
    %986 = vmatprep.subr.bf16.mxu0 0
    %987 = vmatpush1.bf16.msra.mxu0 0
    %988 = vmatprep.subr.bf16.mxu0 0
    %989 = vmatpush1.bf16.msra.mxu0 0
    %990 = vmatprep.subr.bf16.mxu0 0
    %991 = vmatpush1.bf16.msra.mxu0 0
    %992 = vmatprep.mubr.bf16.mxu0 0
    %993 = vmatmul.mubr.bf16.gmra.mrb[0].mxu0 %v654
    %v994 = vpop.f32.mrb[0].mxu0
    %v995 = vadd.f32 0.0, %v994
    %v996 = vpop.f32.mrb[0].mxu0
    %v997 = vpop.f32.mrb[0].mxu0
    %v998 = vadd.f32 0.0, %v997
    %v999 = vpop.f32.mrb[0].mxu0
    %1000 = vmatprep.mubr.bf16.mxu0 0
    %1001 = vmatmul.mubr.bf16.gmra.mrb[0].mxu0 %v655
    %v1002 = vpop.f32.mrb[0].mxu0
    %v1003 = vadd.f32 0.0, %v1002
    %v1004 = vpop.f32.mrb[0].mxu0
    %v1005 = vpop.f32.mrb[0].mxu0
    %v1006 = vadd.f32 0.0, %v1005
    %v1007 = vpop.f32.mrb[0].mxu0
    %1008 = vmatprep.mubr.bf16.mxu0 0
    %1009 = vmatmul.mubr.bf16.gmra.mrb[0].mxu0 %v656
    %v1010 = vpop.f32.mrb[0].mxu0
    %v1011 = vadd.f32 0.0, %v1010
    %v1012 = vpop.f32.mrb[0].mxu0
    %v1013 = vpop.f32.mrb[0].mxu0
    %v1014 = vadd.f32 0.0, %v1013
    %v1015 = vpop.f32.mrb[0].mxu0
    %1016 = vmatprep.mubr.bf16.mxu0 0
    %1017 = vmatmul.mubr.bf16.gmra.mrb[0].mxu0 %v657
    %v1018 = vpop.f32.mrb[0].mxu0
    %v1019 = vadd.f32 0.0, %v1018
    %v1020 = vpop.f32.mrb[0].mxu0
    %v1021 = vpop.f32.mrb[0].mxu0
    %v1022 = vadd.f32 0.0, %v1021
    %v1023 = vpop.f32.mrb[0].mxu0
    %1024 = vmatprep.mubr.bf16.mxu0 0
    %1025 = vmatmul.mubr.bf16.gmra.mrb[0].mxu0 %v658
    %v1026 = vpop.f32.mrb[0].mxu0
    %v1027 = vadd.f32 0.0, %v1026
    %v1028 = vpop.f32.mrb[0].mxu0
    %v1029 = vpop.f32.mrb[0].mxu0
    %v1030 = vadd.f32 0.0, %v1029
    %v1031 = vpop.f32.mrb[0].mxu0
    %1032 = vmatprep.mubr.bf16.mxu0 0
    %1033 = vmatmul.mubr.bf16.gmra.mrb[0].mxu0 %v659
    %v1034 = vpop.f32.mrb[0].mxu0
    %v1035 = vadd.f32 0.0, %v1034
    %v1036 = vpop.f32.mrb[0].mxu0
    %v1037 = vpop.f32.mrb[0].mxu0
    %v1038 = vadd.f32 0.0, %v1037
    %v1039 = vpop.f32.mrb[0].mxu0
    %1040 = vmatprep.mubr.bf16.mxu0 0
    %1041 = vmatmul.mubr.bf16.gmra.mrb[0].mxu0 %v660
    %v1042 = vpop.f32.mrb[0].mxu0
    %v1043 = vadd.f32 0.0, %v1042
    %v1044 = vpop.f32.mrb[0].mxu0
    %v1045 = vpop.f32.mrb[0].mxu0
    %v1046 = vadd.f32 0.0, %v1045
    %v1047 = vpop.f32.mrb[0].mxu0
    %1048 = vmatprep.mubr.bf16.mxu0 0
    %1049 = vmatmul.mubr.bf16.gmra.mrb[0].mxu0 %v661
    %v1050 = vpop.f32.mrb[0].mxu0
    %v1051 = vadd.f32 0.0, %v1050
    %v1052 = vpop.f32.mrb[0].mxu0
    %v1053 = vpop.f32.mrb[0].mxu0
    %v1054 = vadd.f32 0.0, %v1053
    %v1055 = vpop.f32.mrb[0].mxu0
    %1056 = vdwg.mxu0
    %v1057 = vpack.c.bf16 %v998, %v995
    %v1058 = vpack.c.bf16 %v1006, %v1003
    %v1059 = vpack.c.bf16 %v1014, %v1011
    %v1060 = vpack.c.bf16 %v1022, %v1019
    %v1061 = vpack.c.bf16 %v1030, %v1027
    %v1062 = vpack.c.bf16 %v1038, %v1035
    %v1063 = vpack.c.bf16 %v1046, %v1043
    %v1064 = vpack.c.bf16 %v1054, %v1051
    %1065 = vmatprep.subr.bf16.mxu0 0
    %1066 = vmatpush1.bf16.msra.mxu0 %v807
    %1067 = vmatprep.subr.bf16.mxu0 0
    %1068 = vmatpush1.bf16.msra.mxu0 %v808
    %1069 = vmatprep.subr.bf16.mxu0 0
    %1070 = vmatpush1.bf16.msra.mxu0 %v809
    %1071 = vmatprep.subr.bf16.mxu0 0
    %1072 = vmatpush1.bf16.msra.mxu0 %v810
    %1073 = vmatprep.subr.bf16.mxu0 0
    %1074 = vmatpush1.bf16.msra.mxu0 %v811
    %1075 = vmatprep.subr.bf16.mxu0 0
    %1076 = vmatpush1.bf16.msra.mxu0 %v812
    %1077 = vmatprep.subr.bf16.mxu0 0
    %1078 = vmatpush1.bf16.msra.mxu0 %v813
    %1079 = vmatprep.subr.bf16.mxu0 0
    %1080 = vmatpush1.bf16.msra.mxu0 %v814
    %1081 = vmatprep.subr.bf16.mxu0 0
    %1082 = vmatpush1.bf16.msra.mxu0 0
    %1083 = vmatprep.subr.bf16.mxu0 0
    %1084 = vmatpush1.bf16.msra.mxu0 0
    %1085 = vmatprep.subr.bf16.mxu0 0
    %1086 = vmatpush1.bf16.msra.mxu0 0
    %1087 = vmatprep.subr.bf16.mxu0 0
    %1088 = vmatpush1.bf16.msra.mxu0 0
    %1089 = vmatprep.subr.bf16.mxu0 0
    %1090 = vmatpush1.bf16.msra.mxu0 0
    %1091 = vmatprep.subr.bf16.mxu0 0
    %1092 = vmatpush1.bf16.msra.mxu0 0
    %1093 = vmatprep.subr.bf16.mxu0 0
    %1094 = vmatpush1.bf16.msra.mxu0 0
    %1095 = vmatprep.subr.bf16.mxu0 0
    %1096 = vmatpush1.bf16.msra.mxu0 0
    %1097 = vmatprep.mubr.bf16.mxu0 0
    %1098 = vmatmul.mubr.bf16.gmra.mrb[0].mxu0 %v1057
    %v1099 = vpop.f32.mrb[0].mxu0
    %v1100 = vadd.f32 0.0, %v1099
    %v1101 = vpop.f32.mrb[0].mxu0
    %v1102 = vpop.f32.mrb[0].mxu0
    %v1103 = vadd.f32 0.0, %v1102
    %v1104 = vpop.f32.mrb[0].mxu0
    %1105 = vmatprep.mubr.bf16.mxu0 0
    %1106 = vmatmul.mubr.bf16.gmra.mrb[0].mxu0 %v1058
    %v1107 = vpop.f32.mrb[0].mxu0
    %v1108 = vadd.f32 0.0, %v1107
    %v1109 = vpop.f32.mrb[0].mxu0
    %v1110 = vpop.f32.mrb[0].mxu0
    %v1111 = vadd.f32 0.0, %v1110
    %v1112 = vpop.f32.mrb[0].mxu0
    %1113 = vmatprep.mubr.bf16.mxu0 0
    %1114 = vmatmul.mubr.bf16.gmra.mrb[0].mxu0 %v1059
    %v1115 = vpop.f32.mrb[0].mxu0
    %v1116 = vadd.f32 0.0, %v1115
    %v1117 = vpop.f32.mrb[0].mxu0
    %v1118 = vpop.f32.mrb[0].mxu0
    %v1119 = vadd.f32 0.0, %v1118
    %v1120 = vpop.f32.mrb[0].mxu0
    %1121 = vmatprep.mubr.bf16.mxu0 0
    %1122 = vmatmul.mubr.bf16.gmra.mrb[0].mxu0 %v1060
    %v1123 = vpop.f32.mrb[0].mxu0
    %v1124 = vadd.f32 0.0, %v1123
    %v1125 = vpop.f32.mrb[0].mxu0
    %v1126 = vpop.f32.mrb[0].mxu0
    %v1127 = vadd.f32 0.0, %v1126
    %v1128 = vpop.f32.mrb[0].mxu0
    %1129 = vmatprep.mubr.bf16.mxu0 0
    %1130 = vmatmul.mubr.bf16.gmra.mrb[0].mxu0 %v1061
    %v1131 = vpop.f32.mrb[0].mxu0
    %v1132 = vadd.f32 0.0, %v1131
    %v1133 = vpop.f32.mrb[0].mxu0
    %v1134 = vpop.f32.mrb[0].mxu0
    %v1135 = vadd.f32 0.0, %v1134
    %v1136 = vpop.f32.mrb[0].mxu0
    %1137 = vmatprep.mubr.bf16.mxu0 0
    %1138 = vmatmul.mubr.bf16.gmra.mrb[0].mxu0 %v1062
    %v1139 = vpop.f32.mrb[0].mxu0
    %v1140 = vadd.f32 0.0, %v1139
    %v1141 = vpop.f32.mrb[0].mxu0
    %v1142 = vpop.f32.mrb[0].mxu0
    %v1143 = vadd.f32 0.0, %v1142
    %v1144 = vpop.f32.mrb[0].mxu0
    %1145 = vmatprep.mubr.bf16.mxu0 0
    %1146 = vmatmul.mubr.bf16.gmra.mrb[0].mxu0 %v1063
    %v1147 = vpop.f32.mrb[0].mxu0
    %v1148 = vadd.f32 0.0, %v1147
    %v1149 = vpop.f32.mrb[0].mxu0
    %v1150 = vpop.f32.mrb[0].mxu0
    %v1151 = vadd.f32 0.0, %v1150
    %v1152 = vpop.f32.mrb[0].mxu0
    %1153 = vmatprep.mubr.bf16.mxu0 0
    %1154 = vmatmul.mubr.bf16.gmra.mrb[0].mxu0 %v1064
    %v1155 = vpop.f32.mrb[0].mxu0
    %v1156 = vadd.f32 0.0, %v1155
    %v1157 = vpop.f32.mrb[0].mxu0
    %v1158 = vpop.f32.mrb[0].mxu0
    %v1159 = vadd.f32 0.0, %v1158
    %v1160 = vpop.f32.mrb[0].mxu0
    %1161 = vdwg.mxu0
    %v1162 = vadd.f32 %v598, %v1100
    %v1163 = vadd.f32 %v599, %v1103
    %v1164 = vadd.f32 %v600, %v1108
    %v1165 = vadd.f32 %v601, %v1111
    %v1166 = vadd.f32 %v602, %v1116
    %v1167 = vadd.f32 %v603, %v1119
    %v1168 = vadd.f32 %v604, %v1124
    %v1169 = vadd.f32 %v605, %v1127
    %v1170 = vadd.f32 %v606, %v1132
    %v1171 = vadd.f32 %v607, %v1135
    %v1172 = vadd.f32 %v608, %v1140
    %v1173 = vadd.f32 %v609, %v1143
    %v1174 = vadd.f32 %v610, %v1148
    %v1175 = vadd.f32 %v611, %v1151
    %v1176 = vadd.f32 %v612, %v1156
    %v1177 = vadd.f32 %v613, %v1159
    %v1178 = vmax.f32 %v1162, 0.0
    %v1179 = vmax.f32 %v1163, 0.0
    %v1180 = vmax.f32 %v1164, 0.0
    %v1181 = vmax.f32 %v1165, 0.0
    %v1182 = vmax.f32 %v1166, 0.0
    %v1183 = vmax.f32 %v1167, 0.0
    %v1184 = vmax.f32 %v1168, 0.0
    %v1185 = vmax.f32 %v1169, 0.0
    %v1186 = vmax.f32 %v1170, 0.0
    %v1187 = vmax.f32 %v1171, 0.0
    %v1188 = vmax.f32 %v1172, 0.0
    %v1189 = vmax.f32 %v1173, 0.0
    %v1190 = vmax.f32 %v1174, 0.0
    %v1191 = vmax.f32 %v1175, 0.0
    %v1192 = vmax.f32 %v1176, 0.0
    %v1193 = vmax.f32 %v1177, 0.0
    %v1194 = vpack.c.bf16 %v1179, %v1178
    %v1195 = vpack.c.bf16 %v1181, %v1180
    %v1196 = vpack.c.bf16 %v1183, %v1182
    %v1197 = vpack.c.bf16 %v1185, %v1184
    %v1198 = vpack.c.bf16 %v1187, %v1186
    %v1199 = vpack.c.bf16 %v1189, %v1188
    %v1200 = vpack.c.bf16 %v1191, %v1190
    %v1201 = vpack.c.bf16 %v1193, %v1192
    %v1218 = vunpack.c.l.b16 %v220
    %v1219 = vunpack.c.l.b16 %v221
    %v1220 = vunpack.c.l.b16 %v222
    %v1221 = vunpack.c.l.b16 %v223
    %v1222 = vunpack.c.l.b16 %v224
    %v1223 = vunpack.c.l.b16 %v225
    %v1224 = vunpack.c.l.b16 %v226
    %v1225 = vunpack.c.l.b16 %v227
    %v1226 = vunpack.c.l.b16 %v228
    %v1227 = vunpack.c.l.b16 %v229
    %v1228 = vunpack.c.l.b16 %v230
    %v1229 = vunpack.c.l.b16 %v231
    %v1230 = vunpack.c.l.b16 %v232
    %v1231 = vunpack.c.l.b16 %v233
    %v1232 = vunpack.c.l.b16 %v234
    %v1233 = vunpack.c.l.b16 %v235
    %v1234 = vpack.c.b16 %v1219, %v1218
    %v1235 = vpack.c.b16 %v1221, %v1220
    %v1236 = vpack.c.b16 %v1223, %v1222
    %v1237 = vpack.c.b16 %v1225, %v1224
    %v1238 = vpack.c.b16 %v1227, %v1226
    %v1239 = vpack.c.b16 %v1229, %v1228
    %v1240 = vpack.c.b16 %v1231, %v1230
    %v1241 = vpack.c.b16 %v1233, %v1232
    %1250 = vmatprep.subr.bf16.mxu0 0
    %1251 = vmatpush1.bf16.msra.mxu0 %v1194
    %1252 = vmatprep.subr.bf16.mxu0 0
    %1253 = vmatpush1.bf16.msra.mxu0 %v1195
    %1254 = vmatprep.subr.bf16.mxu0 0
    %1255 = vmatpush1.bf16.msra.mxu0 %v1196
    %1256 = vmatprep.subr.bf16.mxu0 0
    %1257 = vmatpush1.bf16.msra.mxu0 %v1197
    %1258 = vmatprep.subr.bf16.mxu0 0
    %1259 = vmatpush1.bf16.msra.mxu0 %v1198
    %1260 = vmatprep.subr.bf16.mxu0 0
    %1261 = vmatpush1.bf16.msra.mxu0 %v1199
    %1262 = vmatprep.subr.bf16.mxu0 0
    %1263 = vmatpush1.bf16.msra.mxu0 %v1200
    %1264 = vmatprep.subr.bf16.mxu0 0
    %1265 = vmatpush1.bf16.msra.mxu0 %v1201
    %1266 = vmatprep.subr.bf16.mxu0 0
    %1267 = vmatpush1.bf16.msra.mxu0 0
    %1268 = vmatprep.subr.bf16.mxu0 0
    %1269 = vmatpush1.bf16.msra.mxu0 0
    %1270 = vmatprep.subr.bf16.mxu0 0
    %1271 = vmatpush1.bf16.msra.mxu0 0
    %1272 = vmatprep.subr.bf16.mxu0 0
    %1273 = vmatpush1.bf16.msra.mxu0 0
    %1274 = vmatprep.subr.bf16.mxu0 0
    %1275 = vmatpush1.bf16.msra.mxu0 0
    %1276 = vmatprep.subr.bf16.mxu0 0
    %1277 = vmatpush1.bf16.msra.mxu0 0
    %1278 = vmatprep.subr.bf16.mxu0 0
    %1279 = vmatpush1.bf16.msra.mxu0 0
    %1280 = vmatprep.subr.bf16.mxu0 0
    %1281 = vmatpush1.bf16.msra.mxu0 0
    %1282 = vmatprep.mubr.bf16.mxu0 0
    %1283 = vmatmul.mubr.bf16.gmra.mrb[0].mxu0 %v1234
    %v1284 = vpop.f32.mrb[0].mxu0
    %v1285 = vadd.f32 0.0, %v1284
    %v1286 = vpop.f32.mrb[0].mxu0
    %v1287 = vpop.f32.mrb[0].mxu0
    %v1288 = vadd.f32 0.0, %v1287
    %v1289 = vpop.f32.mrb[0].mxu0
    %1290 = vmatprep.mubr.bf16.mxu0 0
    %1291 = vmatmul.mubr.bf16.gmra.mrb[0].mxu0 %v1235
    %v1292 = vpop.f32.mrb[0].mxu0
    %v1293 = vadd.f32 0.0, %v1292
    %v1294 = vpop.f32.mrb[0].mxu0
    %v1295 = vpop.f32.mrb[0].mxu0
    %v1296 = vadd.f32 0.0, %v1295
    %v1297 = vpop.f32.mrb[0].mxu0
    %1298 = vmatprep.mubr.bf16.mxu0 0
    %1299 = vmatmul.mubr.bf16.gmra.mrb[0].mxu0 %v1236
    %v1300 = vpop.f32.mrb[0].mxu0
    %v1301 = vadd.f32 0.0, %v1300
    %v1302 = vpop.f32.mrb[0].mxu0
    %v1303 = vpop.f32.mrb[0].mxu0
    %v1304 = vadd.f32 0.0, %v1303
    %v1305 = vpop.f32.mrb[0].mxu0
    %1306 = vmatprep.mubr.bf16.mxu0 0
    %1307 = vmatmul.mubr.bf16.gmra.mrb[0].mxu0 %v1237
    %v1308 = vpop.f32.mrb[0].mxu0
    %v1309 = vadd.f32 0.0, %v1308
    %v1310 = vpop.f32.mrb[0].mxu0
    %v1311 = vpop.f32.mrb[0].mxu0
    %v1312 = vadd.f32 0.0, %v1311
    %v1313 = vpop.f32.mrb[0].mxu0
    %1314 = vmatprep.mubr.bf16.mxu0 0
    %1315 = vmatmul.mubr.bf16.gmra.mrb[0].mxu0 %v1238
    %v1316 = vpop.f32.mrb[0].mxu0
    %v1317 = vadd.f32 0.0, %v1316
    %v1318 = vpop.f32.mrb[0].mxu0
    %v1319 = vpop.f32.mrb[0].mxu0
    %v1320 = vadd.f32 0.0, %v1319
    %v1321 = vpop.f32.mrb[0].mxu0
    %1322 = vmatprep.mubr.bf16.mxu0 0
    %1323 = vmatmul.mubr.bf16.gmra.mrb[0].mxu0 %v1239
    %v1324 = vpop.f32.mrb[0].mxu0
    %v1325 = vadd.f32 0.0, %v1324
    %v1326 = vpop.f32.mrb[0].mxu0
    %v1327 = vpop.f32.mrb[0].mxu0
    %v1328 = vadd.f32 0.0, %v1327
    %v1329 = vpop.f32.mrb[0].mxu0
    %1330 = vmatprep.mubr.bf16.mxu0 0
    %1331 = vmatmul.mubr.bf16.gmra.mrb[0].mxu0 %v1240
    %v1332 = vpop.f32.mrb[0].mxu0
    %v1333 = vadd.f32 0.0, %v1332
    %v1334 = vpop.f32.mrb[0].mxu0
    %v1335 = vpop.f32.mrb[0].mxu0
    %v1336 = vadd.f32 0.0, %v1335
    %v1337 = vpop.f32.mrb[0].mxu0
    %1338 = vmatprep.mubr.bf16.mxu0 0
    %1339 = vmatmul.mubr.bf16.gmra.mrb[0].mxu0 %v1241
    %v1340 = vpop.f32.mrb[0].mxu0
    %v1341 = vadd.f32 0.0, %v1340
    %v1342 = vpop.f32.mrb[0].mxu0
    %v1343 = vpop.f32.mrb[0].mxu0
    %v1344 = vadd.f32 0.0, %v1343
    %v1345 = vpop.f32.mrb[0].mxu0
    %1346 = vdwg.mxu0
    %1347 = vmatprep.subr.mxu0 0.0
    %1348 = vmatpush1.msra.mxu0 %v284
    %1349 = vmatprep.subr.mxu0 0.0
    %1350 = vmatpush1.msra.mxu0 %v285
    %1351 = vmatprep.subr.mxu0 0.0
    %1352 = vmatpush1.msra.mxu0 %v286
    %1353 = vmatprep.subr.mxu0 0.0
    %1354 = vmatpush1.msra.mxu0 %v287
    %1355 = vmatprep.subr.mxu0 0.0
    %1356 = vmatpush1.msra.mxu0 %v288
    %1357 = vmatprep.subr.mxu0 0.0
    %1358 = vmatpush1.msra.mxu0 %v289
    %1359 = vmatprep.subr.mxu0 0.0
    %1360 = vmatpush1.msra.mxu0 %v290
    %1361 = vmatprep.subr.mxu0 0.0
    %1362 = vmatpush1.msra.mxu0 %v291
    %1363 = vmatprep.subr.mxu0 0.0
    %1364 = vmatpush1.msra.mxu0 %v292
    %1365 = vmatprep.subr.mxu0 0.0
    %1366 = vmatpush1.msra.mxu0 %v293
    %1367 = vmatprep.subr.mxu0 0.0
    %1368 = vmatpush1.msra.mxu0 %v294
    %1369 = vmatprep.subr.mxu0 0.0
    %1370 = vmatpush1.msra.mxu0 %v295
    %1371 = vmatprep.subr.mxu0 0.0
    %1372 = vmatpush1.msra.mxu0 %v296
    %1373 = vmatprep.subr.mxu0 0.0
    %1374 = vmatpush1.msra.mxu0 %v297
    %1375 = vmatprep.subr.mxu0 0.0
    %1376 = vmatpush1.msra.mxu0 %v298
    %1377 = vmatprep.subr.mxu0 0.0
    %1378 = vmatpush1.msra.mxu0 %v299
    %1379 = vmatprep.subr.mxu0 0.0
    %1380 = vmatpush1.msra.mxu0 0.0
    %1381 = vmatprep.subr.mxu0 0.0
    %1382 = vmatpush1.msra.mxu0 0.0
    %1383 = vmatprep.subr.mxu0 0.0
    %1384 = vmatpush1.msra.mxu0 0.0
    %1385 = vmatprep.subr.mxu0 0.0
    %1386 = vmatpush1.msra.mxu0 0.0
    %1387 = vmatprep.subr.mxu0 0.0
    %1388 = vmatpush1.msra.mxu0 0.0
    %1389 = vmatprep.subr.mxu0 0.0
    %1390 = vmatpush1.msra.mxu0 0.0
    %1391 = vmatprep.subr.mxu0 0.0
    %1392 = vmatpush1.msra.mxu0 0.0
    %1393 = vmatprep.subr.mxu0 0.0
    %1394 = vmatpush1.msra.mxu0 0.0
    %1395 = vmatprep.subr.mxu0 0.0
    %1396 = vmatpush1.msra.mxu0 0.0
    %1397 = vmatprep.subr.mxu0 0.0
    %1398 = vmatpush1.msra.mxu0 0.0
    %1399 = vmatprep.subr.mxu0 0.0
    %1400 = vmatpush1.msra.mxu0 0.0
    %1401 = vmatprep.subr.mxu0 0.0
    %1402 = vmatpush1.msra.mxu0 0.0
    %1403 = vmatprep.subr.mxu0 0.0
    %1404 = vmatpush1.msra.mxu0 0.0
    %1405 = vmatprep.subr.mxu0 0.0
    %1406 = vmatpush1.msra.mxu0 0.0
    %1407 = vmatprep.subr.mxu0 0.0
    %1408 = vmatpush1.msra.mxu0 0.0
    %1409 = vmatprep.subr.mxu0 0.0
    %1410 = vmatpush1.msra.mxu0 0.0
    %1411 = vmatprep.mubr.f32.mxu0 0.0
    %1412 = vmatmul.mubr.f32.gmra.mrb[0].mxu0 %v1285
    %v1413 = vpop.f32.mrb[0].mxu0
    %v1414 = vadd.f32 0.0, %v1413
    %v1415 = vpop.f32.mrb[0].mxu0
    %1416 = vmatprep.mubr.f32.mxu0 0.0
    %1417 = vmatmul.mubr.f32.gmra.mrb[0].mxu0 %v1288
    %v1418 = vpop.f32.mrb[0].mxu0
    %v1419 = vadd.f32 0.0, %v1418
    %v1420 = vpop.f32.mrb[0].mxu0
    %1421 = vmatprep.mubr.f32.mxu0 0.0
    %1422 = vmatmul.mubr.f32.gmra.mrb[0].mxu0 %v1293
    %v1423 = vpop.f32.mrb[0].mxu0
    %v1424 = vadd.f32 0.0, %v1423
    %v1425 = vpop.f32.mrb[0].mxu0
    %1426 = vmatprep.mubr.f32.mxu0 0.0
    %1427 = vmatmul.mubr.f32.gmra.mrb[0].mxu0 %v1296
    %v1428 = vpop.f32.mrb[0].mxu0
    %v1429 = vadd.f32 0.0, %v1428
    %v1430 = vpop.f32.mrb[0].mxu0
    %1431 = vmatprep.mubr.f32.mxu0 0.0
    %1432 = vmatmul.mubr.f32.gmra.mrb[0].mxu0 %v1301
    %v1433 = vpop.f32.mrb[0].mxu0
    %v1434 = vadd.f32 0.0, %v1433
    %v1435 = vpop.f32.mrb[0].mxu0
    %1436 = vmatprep.mubr.f32.mxu0 0.0
    %1437 = vmatmul.mubr.f32.gmra.mrb[0].mxu0 %v1304
    %v1438 = vpop.f32.mrb[0].mxu0
    %v1439 = vadd.f32 0.0, %v1438
    %v1440 = vpop.f32.mrb[0].mxu0
    %1441 = vmatprep.mubr.f32.mxu0 0.0
    %1442 = vmatmul.mubr.f32.gmra.mrb[0].mxu0 %v1309
    %v1443 = vpop.f32.mrb[0].mxu0
    %v1444 = vadd.f32 0.0, %v1443
    %v1445 = vpop.f32.mrb[0].mxu0
    %1446 = vmatprep.mubr.f32.mxu0 0.0
    %1447 = vmatmul.mubr.f32.gmra.mrb[0].mxu0 %v1312
    %v1448 = vpop.f32.mrb[0].mxu0
    %v1449 = vadd.f32 0.0, %v1448
    %v1450 = vpop.f32.mrb[0].mxu0
    %1451 = vmatprep.mubr.f32.mxu0 0.0
    %1452 = vmatmul.mubr.f32.gmra.mrb[0].mxu0 %v1317
    %v1453 = vpop.f32.mrb[0].mxu0
    %v1454 = vadd.f32 0.0, %v1453
    %v1455 = vpop.f32.mrb[0].mxu0
    %1456 = vmatprep.mubr.f32.mxu0 0.0
    %1457 = vmatmul.mubr.f32.gmra.mrb[0].mxu0 %v1320
    %v1458 = vpop.f32.mrb[0].mxu0
    %v1459 = vadd.f32 0.0, %v1458
    %v1460 = vpop.f32.mrb[0].mxu0
    %1461 = vmatprep.mubr.f32.mxu0 0.0
    %1462 = vmatmul.mubr.f32.gmra.mrb[0].mxu0 %v1325
    %v1463 = vpop.f32.mrb[0].mxu0
    %v1464 = vadd.f32 0.0, %v1463
    %v1465 = vpop.f32.mrb[0].mxu0
    %1466 = vmatprep.mubr.f32.mxu0 0.0
    %1467 = vmatmul.mubr.f32.gmra.mrb[0].mxu0 %v1328
    %v1468 = vpop.f32.mrb[0].mxu0
    %v1469 = vadd.f32 0.0, %v1468
    %v1470 = vpop.f32.mrb[0].mxu0
    %1471 = vmatprep.mubr.f32.mxu0 0.0
    %1472 = vmatmul.mubr.f32.gmra.mrb[0].mxu0 %v1333
    %v1473 = vpop.f32.mrb[0].mxu0
    %v1474 = vadd.f32 0.0, %v1473
    %v1475 = vpop.f32.mrb[0].mxu0
    %1476 = vmatprep.mubr.f32.mxu0 0.0
    %1477 = vmatmul.mubr.f32.gmra.mrb[0].mxu0 %v1336
    %v1478 = vpop.f32.mrb[0].mxu0
    %v1479 = vadd.f32 0.0, %v1478
    %v1480 = vpop.f32.mrb[0].mxu0
    %1481 = vmatprep.mubr.f32.mxu0 0.0
    %1482 = vmatmul.mubr.f32.gmra.mrb[0].mxu0 %v1341
    %v1483 = vpop.f32.mrb[0].mxu0
    %v1484 = vadd.f32 0.0, %v1483
    %v1485 = vpop.f32.mrb[0].mxu0
    %1486 = vmatprep.mubr.f32.mxu0 0.0
    %1487 = vmatmul.mubr.f32.gmra.mrb[0].mxu0 %v1344
    %v1488 = vpop.f32.mrb[0].mxu0
    %v1489 = vadd.f32 0.0, %v1488
    %v1490 = vpop.f32.mrb[0].mxu0
    %1491 = vdwg.mxu0
    %1492 = vmatprep.subr.mxu0 0.0
    %1493 = vmatpush1.msra.mxu0 %v268
    %1494 = vmatprep.subr.mxu0 0.0
    %1495 = vmatpush1.msra.mxu0 %v269
    %1496 = vmatprep.subr.mxu0 0.0
    %1497 = vmatpush1.msra.mxu0 %v270
    %1498 = vmatprep.subr.mxu0 0.0
    %1499 = vmatpush1.msra.mxu0 %v271
    %1500 = vmatprep.subr.mxu0 0.0
    %1501 = vmatpush1.msra.mxu0 %v272
    %1502 = vmatprep.subr.mxu0 0.0
    %1503 = vmatpush1.msra.mxu0 %v273
    %1504 = vmatprep.subr.mxu0 0.0
    %1505 = vmatpush1.msra.mxu0 %v274
    %1506 = vmatprep.subr.mxu0 0.0
    %1507 = vmatpush1.msra.mxu0 %v275
    %1508 = vmatprep.subr.mxu0 0.0
    %1509 = vmatpush1.msra.mxu0 %v276
    %1510 = vmatprep.subr.mxu0 0.0
    %1511 = vmatpush1.msra.mxu0 %v277
    %1512 = vmatprep.subr.mxu0 0.0
    %1513 = vmatpush1.msra.mxu0 %v278
    %1514 = vmatprep.subr.mxu0 0.0
    %1515 = vmatpush1.msra.mxu0 %v279
    %1516 = vmatprep.subr.mxu0 0.0
    %1517 = vmatpush1.msra.mxu0 %v280
    %1518 = vmatprep.subr.mxu0 0.0
    %1519 = vmatpush1.msra.mxu0 %v281
    %1520 = vmatprep.subr.mxu0 0.0
    %1521 = vmatpush1.msra.mxu0 %v282
    %1522 = vmatprep.subr.mxu0 0.0
    %1523 = vmatpush1.msra.mxu0 %v283
    %1524 = vmatprep.subr.mxu0 0.0
    %1525 = vmatpush1.msra.mxu0 0.0
    %1526 = vmatprep.subr.mxu0 0.0
    %1527 = vmatpush1.msra.mxu0 0.0
    %1528 = vmatprep.subr.mxu0 0.0
    %1529 = vmatpush1.msra.mxu0 0.0
    %1530 = vmatprep.subr.mxu0 0.0
    %1531 = vmatpush1.msra.mxu0 0.0
    %1532 = vmatprep.subr.mxu0 0.0
    %1533 = vmatpush1.msra.mxu0 0.0
    %1534 = vmatprep.subr.mxu0 0.0
    %1535 = vmatpush1.msra.mxu0 0.0
    %1536 = vmatprep.subr.mxu0 0.0
    %1537 = vmatpush1.msra.mxu0 0.0
    %1538 = vmatprep.subr.mxu0 0.0
    %1539 = vmatpush1.msra.mxu0 0.0
    %1540 = vmatprep.subr.mxu0 0.0
    %1541 = vmatpush1.msra.mxu0 0.0
    %1542 = vmatprep.subr.mxu0 0.0
    %1543 = vmatpush1.msra.mxu0 0.0
    %1544 = vmatprep.subr.mxu0 0.0
    %1545 = vmatpush1.msra.mxu0 0.0
    %1546 = vmatprep.subr.mxu0 0.0
    %1547 = vmatpush1.msra.mxu0 0.0
    %1548 = vmatprep.subr.mxu0 0.0
    %1549 = vmatpush1.msra.mxu0 0.0
    %1550 = vmatprep.subr.mxu0 0.0
    %1551 = vmatpush1.msra.mxu0 0.0
    %1552 = vmatprep.subr.mxu0 0.0
    %1553 = vmatpush1.msra.mxu0 0.0
    %1554 = vmatprep.subr.mxu0 0.0
    %1555 = vmatpush1.msra.mxu0 0.0
    %1556 = vmatprep.mubr.f32.mxu0 0.0
    %1557 = vmatmul.mubr.f32.gmra.mrb[0].mxu0 %v156
    %v1558 = vpop.f32.mrb[0].mxu0
    %v1559 = vadd.f32 %v1414, %v1558
    %v1560 = vpop.f32.mrb[0].mxu0
    %1561 = vmatprep.mubr.f32.mxu0 0.0
    %1562 = vmatmul.mubr.f32.gmra.mrb[0].mxu0 %v157
    %v1563 = vpop.f32.mrb[0].mxu0
    %v1564 = vadd.f32 %v1419, %v1563
    %v1565 = vpop.f32.mrb[0].mxu0
    %1566 = vmatprep.mubr.f32.mxu0 0.0
    %1567 = vmatmul.mubr.f32.gmra.mrb[0].mxu0 %v158
    %v1568 = vpop.f32.mrb[0].mxu0
    %v1569 = vadd.f32 %v1424, %v1568
    %v1570 = vpop.f32.mrb[0].mxu0
    %1571 = vmatprep.mubr.f32.mxu0 0.0
    %1572 = vmatmul.mubr.f32.gmra.mrb[0].mxu0 %v159
    %v1573 = vpop.f32.mrb[0].mxu0
    %v1574 = vadd.f32 %v1429, %v1573
    %v1575 = vpop.f32.mrb[0].mxu0
    %1576 = vmatprep.mubr.f32.mxu0 0.0
    %1577 = vmatmul.mubr.f32.gmra.mrb[0].mxu0 %v160
    %v1578 = vpop.f32.mrb[0].mxu0
    %v1579 = vadd.f32 %v1434, %v1578
    %v1580 = vpop.f32.mrb[0].mxu0
    %1581 = vmatprep.mubr.f32.mxu0 0.0
    %1582 = vmatmul.mubr.f32.gmra.mrb[0].mxu0 %v161
    %v1583 = vpop.f32.mrb[0].mxu0
    %v1584 = vadd.f32 %v1439, %v1583
    %v1585 = vpop.f32.mrb[0].mxu0
    %1586 = vmatprep.mubr.f32.mxu0 0.0
    %1587 = vmatmul.mubr.f32.gmra.mrb[0].mxu0 %v162
    %v1588 = vpop.f32.mrb[0].mxu0
    %v1589 = vadd.f32 %v1444, %v1588
    %v1590 = vpop.f32.mrb[0].mxu0
    %1591 = vmatprep.mubr.f32.mxu0 0.0
    %1592 = vmatmul.mubr.f32.gmra.mrb[0].mxu0 %v163
    %v1593 = vpop.f32.mrb[0].mxu0
    %v1594 = vadd.f32 %v1449, %v1593
    %v1595 = vpop.f32.mrb[0].mxu0
    %1596 = vmatprep.mubr.f32.mxu0 0.0
    %1597 = vmatmul.mubr.f32.gmra.mrb[0].mxu0 %v164
    %v1598 = vpop.f32.mrb[0].mxu0
    %v1599 = vadd.f32 %v1454, %v1598
    %v1600 = vpop.f32.mrb[0].mxu0
    %1601 = vmatprep.mubr.f32.mxu0 0.0
    %1602 = vmatmul.mubr.f32.gmra.mrb[0].mxu0 %v165
    %v1603 = vpop.f32.mrb[0].mxu0
    %v1604 = vadd.f32 %v1459, %v1603
    %v1605 = vpop.f32.mrb[0].mxu0
    %1606 = vmatprep.mubr.f32.mxu0 0.0
    %1607 = vmatmul.mubr.f32.gmra.mrb[0].mxu0 %v166
    %v1608 = vpop.f32.mrb[0].mxu0
    %v1609 = vadd.f32 %v1464, %v1608
    %v1610 = vpop.f32.mrb[0].mxu0
    %1611 = vmatprep.mubr.f32.mxu0 0.0
    %1612 = vmatmul.mubr.f32.gmra.mrb[0].mxu0 %v167
    %v1613 = vpop.f32.mrb[0].mxu0
    %v1614 = vadd.f32 %v1469, %v1613
    %v1615 = vpop.f32.mrb[0].mxu0
    %1616 = vmatprep.mubr.f32.mxu0 0.0
    %1617 = vmatmul.mubr.f32.gmra.mrb[0].mxu0 %v168
    %v1618 = vpop.f32.mrb[0].mxu0
    %v1619 = vadd.f32 %v1474, %v1618
    %v1620 = vpop.f32.mrb[0].mxu0
    %1621 = vmatprep.mubr.f32.mxu0 0.0
    %1622 = vmatmul.mubr.f32.gmra.mrb[0].mxu0 %v169
    %v1623 = vpop.f32.mrb[0].mxu0
    %v1624 = vadd.f32 %v1479, %v1623
    %v1625 = vpop.f32.mrb[0].mxu0
    %1626 = vmatprep.mubr.f32.mxu0 0.0
    %1627 = vmatmul.mubr.f32.gmra.mrb[0].mxu0 %v170
    %v1628 = vpop.f32.mrb[0].mxu0
    %v1629 = vadd.f32 %v1484, %v1628
    %v1630 = vpop.f32.mrb[0].mxu0
    %1631 = vmatprep.mubr.f32.mxu0 0.0
    %1632 = vmatmul.mubr.f32.gmra.mrb[0].mxu0 %v171
    %v1633 = vpop.f32.mrb[0].mxu0
    %v1634 = vadd.f32 %v1489, %v1633
    %v1635 = vpop.f32.mrb[0].mxu0
    %1636 = vdwg.mxu0
    %v1637 = vmax.f32 %v1559, 0.0
    %v1638 = vmax.f32 %v1564, 0.0
    %v1639 = vmax.f32 %v1569, 0.0
    %v1640 = vmax.f32 %v1574, 0.0
    %v1641 = vmax.f32 %v1579, 0.0
    %v1642 = vmax.f32 %v1584, 0.0
    %v1643 = vmax.f32 %v1589, 0.0
    %v1644 = vmax.f32 %v1594, 0.0
    %v1645 = vmax.f32 %v1599, 0.0
    %v1646 = vmax.f32 %v1604, 0.0
    %v1647 = vmax.f32 %v1609, 0.0
    %v1648 = vmax.f32 %v1614, 0.0
    %v1649 = vmax.f32 %v1619, 0.0
    %v1650 = vmax.f32 %v1624, 0.0
    %v1651 = vmax.f32 %v1629, 0.0
    %v1652 = vmax.f32 %v1634, 0.0
    %1653 = vst [vmem:[#allocation17] sm:$0xff] %v1637
    %1654 = vst [vmem:[#allocation17 + $0x8] sm:$0xff] %v1638
    %1655 = vst [vmem:[#allocation17 + $0x10] sm:$0xff] %v1639
    %1656 = vst [vmem:[#allocation17 + $0x18] sm:$0xff] %v1640
    %1657 = vst [vmem:[#allocation17 + $0x20] sm:$0xff] %v1641
    %1658 = vst [vmem:[#allocation17 + $0x28] sm:$0xff] %v1642
    %1659 = vst [vmem:[#allocation17 + $0x30] sm:$0xff] %v1643
    %1660 = vst [vmem:[#allocation17 + $0x38] sm:$0xff] %v1644
    %1661 = vst [vmem:[#allocation17 + $0x40] sm:$0xff] %v1645
    %1662 = vst [vmem:[#allocation17 + $0x48] sm:$0xff] %v1646
    %1663 = vst [vmem:[#allocation17 + $0x50] sm:$0xff] %v1647
    %1664 = vst [vmem:[#allocation17 + $0x58] sm:$0xff] %v1648
    %1665 = vst [vmem:[#allocation17 + $0x60] sm:$0xff] %v1649
    %1666 = vst [vmem:[#allocation17 + $0x68] sm:$0xff] %v1650
    %1667 = vst [vmem:[#allocation17 + $0x70] sm:$0xff] %v1651
    %1668 = vst [vmem:[#allocation17 + $0x78] sm:$0xff] %v1652
    // Predicated region
    $region74: #{tpu_custom_call.1} parent=1 // pred_check
      _
    $region75: #{tpu_custom_call.1} parent=1 // pred_check_branch
      %1670 = sbr.rel (0) target = $region77
    $region76: #{tpu_custom_call.1} parent=1 // pred_region
      %s1672 = ssub.s32 2048, 2048
      %1673 = vsyncadd [#allocation4], %s1672
      %s1674 = sshll.u32 [#allocation17], 4
      %s1675 = int_to_ptr.vmem [resolvable:$true] %s1674
      %1680 = dma.vmem_to_hbm [thread:$0]  %s1675, 2048, %s9, [#allocation4], 128, 128, 8
    $region77: #{tpu_custom_call.1} parent=1 // pred_fallthru
      _
    // Predicated region
    $region78: #{tpu_custom_call.1} parent=1 // pred_check
      _
    $region79: #{tpu_custom_call.1} parent=1 // pred_check_branch
      %1682 = sbr.rel (0) target = $region81
    $region80: #{tpu_custom_call.1} parent=1 // pred_region
      %1683 = dma.done [#allocation4], 2048
    $region81: #{tpu_custom_call.1} parent=1 // pred_fallthru
      _
    %1684 = vsyncpa [#allocation3], 1
    %1685 = vsyncpa [#allocation6], 1
    %1686 = vsyncpa [#allocation9], 1
    %1687 = vsyncpa [#allocation12], 1
    %1688 = vsyncpa [#allocation15], 1
    %1689 = vsyncpa [#allocation4], 1

</llo_original>
